<compile_context>
chip_gen: v6e
topology: v6e:2x2x1
jax: 0.10.0
libtpu: 0.0.40
codegen_flags: <defaults>
</compile_context>

<pallas_src>
import functools

import jax
import jax.numpy as jnp
from jax import lax
from jax.experimental import pallas as pl
from jax.experimental.pallas import tpu as pltpu


def _round_up(x, m):
    return (x + m - 1) // m * m


def _gru_layer0_kernel(x_ref,      # (Tc*Bp, D)   one time-chunk; row index = t_in_chunk*Bp + b
                       w_i_ref,    # (D, 3*Hp)    fused input weights  [r | z | n], gate-padded
                       w_h_ref,    # (Hp, 3*Hp)   fused hidden weights [r | z | n], gate-padded
                       b_i_ref,    # (1, 3*Hp)    [b_ir+b_hr | b_iz+b_hz | b_in] (folded into x-proj)
                       b_hn_ref,   # (1, Hp)      hidden bias of the n gate (stays inside r*(..))
                       out_ref,    # (Bp, Hp)     final hidden state of layer 0
                       h_ref,      # VMEM scratch (Bp, Hp): hidden state carried across chunks
                       xp_ref,     # VMEM scratch (Tc*Bp, 3*Hp): chunk input projection
                       *, seq_len, chunk):
    Bp, Hp = out_ref.shape
    c = pl.program_id(0)

    @pl.when(c == 0)
    def _init():
        h_ref[...] = jnp.zeros_like(h_ref)

    # ---- Phase 1: chunk-wide input projection — one big matmul, off the serial path. ----
    xp_ref[...] = (
        jnp.dot(x_ref[...], w_i_ref[...], preferred_element_type=jnp.float32)
        + b_i_ref[...])

    # Hoist the (1, Hp) -> (Bp, Hp) bias broadcast out of the recurrence.
    b_hn = jnp.broadcast_to(b_hn_ref[...], (Bp, Hp))
    base = c * chunk

    # ---- Phase 2: serial recurrence — a single fused MXU matmul per timestep. ----
    def step(t, h):
        row = pl.multiple_of(t * Bp, 8)
        xp_t = xp_ref[pl.ds(row, Bp), :]                                    # (Bp, 3Hp)
        hp = jnp.dot(h, w_h_ref[...], preferred_element_type=jnp.float32)   # (Bp, 3Hp)
        r = jax.nn.sigmoid(xp_t[:, 0 * Hp:1 * Hp] + hp[:, 0 * Hp:1 * Hp])
        z = jax.nn.sigmoid(xp_t[:, 1 * Hp:2 * Hp] + hp[:, 1 * Hp:2 * Hp])
        n = jnp.tanh(xp_t[:, 2 * Hp:3 * Hp] + r * (hp[:, 2 * Hp:3 * Hp] + b_hn))
        h_new = (1.0 - z) * n + z * h
        if seq_len % chunk == 0:               # static: no time padding -> no mask needed
            return h_new
        return jnp.where(base + t < seq_len, h_new, h)   # skip zero-padded timesteps

    unroll = True if chunk <= 16 else 4
    h_ref[...] = lax.fori_loop(0, chunk, step, h_ref[...], unroll=unroll)

    @pl.when(c == pl.num_programs(0) - 1)
    def _finalize():
        out_ref[...] = h_ref[...]


@functools.partial(jax.jit, static_argnames=("hidden_size",))
def context_forward(data, params, hidden_size):
    """data: (B, T, D) float32 (batch_first, like the PyTorch module).

    Returns (B, H): the final hidden state of GRU layer 0, i.e. hidden[0].squeeze(0).
    """
    B, T, D = data.shape
    H = hidden_size
    Hp = _round_up(H, 128)     # pad each gate to a full 128-lane vreg width
    Bp = _round_up(B, 8)       # pad batch to the f32 sublane count

    # Time-chunk size: bounds VMEM (x chunk double-buffered + resident weights + xp scratch
    # stay well under the default scoped VMEM on v5e/v6e/v7x) while streaming the sequence.
    chunk = min(T, 128)
    T_pad = _round_up(T, chunk)
    n_chunks = T_pad // chunk

    w_ih, w_hh, b_ih, b_hh = params   # PyTorch layout: (3H,D), (3H,H), (3H,), (3H,); gates [r|z|n]

    def fuse_pad_cols(w_t):           # (K, 3H) -> (K, 3Hp): pad each gate block to Hp lanes
        return jnp.concatenate(
            [jnp.pad(w_t[:, g * H:(g + 1) * H], ((0, 0), (0, Hp - H))) for g in range(3)],
            axis=1)

    w_i = fuse_pad_cols(w_ih.T.astype(jnp.float32))                        # (D, 3Hp)
    w_h = jnp.pad(fuse_pad_cols(w_hh.T.astype(jnp.float32)),
                  ((0, Hp - H), (0, 0)))                                   # (Hp, 3Hp)

    def pad_gate(v):                  # (H,) -> (Hp,)
        return jnp.pad(v.astype(jnp.float32), (0, Hp - H))

    # r/z biases (input + hidden) fold into the precomputed projection; b_hn must stay separate.
    b_i = jnp.concatenate([pad_gate(b_ih[:H] + b_hh[:H]),
                           pad_gate(b_ih[H:2 * H] + b_hh[H:2 * H]),
                           pad_gate(b_ih[2 * H:])]).reshape(1, 3 * Hp)
    b_hn = pad_gate(b_hh[2 * H:]).reshape(1, Hp)

    # Time-major, pad batch -> Bp and time -> T_pad with zeros, flatten (t, b) into rows.
    x_tm = jnp.transpose(data, (1, 0, 2)).astype(jnp.float32)              # (T, B, D)
    x_tm = jnp.pad(x_tm, ((0, T_pad - T), (0, Bp - B), (0, 0)))            # (T_pad, Bp, D)
    x2d = x_tm.reshape(T_pad * Bp, D)                                      # row = t*Bp + b

    kernel = functools.partial(_gru_layer0_kernel, seq_len=T, chunk=chunk)

    out = pl.pallas_call(
        kernel,
        out_shape=jax.ShapeDtypeStruct((Bp, Hp), jnp.float32),
        grid_spec=pltpu.PrefetchScalarGridSpec(
            num_scalar_prefetch=0,
            grid=(n_chunks,),
            in_specs=[
                pl.BlockSpec((chunk * Bp, D), lambda c: (c, 0)),   # streamed x chunks
                pl.BlockSpec((D, 3 * Hp), lambda c: (0, 0)),       # resident weights / biases
                pl.BlockSpec((Hp, 3 * Hp), lambda c: (0, 0)),
                pl.BlockSpec((1, 3 * Hp), lambda c: (0, 0)),
                pl.BlockSpec((1, Hp), lambda c: (0, 0)),
            ],
            out_specs=pl.BlockSpec((Bp, Hp), lambda c: (0, 0)),
            scratch_shapes=[
                pltpu.VMEM((Bp, Hp), jnp.float32),                 # carried hidden state
                pltpu.VMEM((chunk * Bp, 3 * Hp), jnp.float32),     # chunk input projection
            ],
        ),
        compiler_params=pltpu.CompilerParams(
            dimension_semantics=("arbitrary",)),   # hidden state carries across time chunks
    )(x2d, w_i, w_h, b_i, b_hn)

    return out[:B, :H]


def init_gru_layer0_params(key, input_dim, hidden_size):
    """Deterministic init mimicking PyTorch nn.GRU layer-0 params (uniform(-1/sqrt(H), 1/sqrt(H)))."""
    H, D = hidden_size, input_dim
    stdv = 1.0 / jnp.sqrt(jnp.float32(H))
    k1, k2, k3, k4 = jax.random.split(key, 4)
    w_ih = jax.random.uniform(k1, (3 * H, D), jnp.float32, -stdv, stdv)
    w_hh = jax.random.uniform(k2, (3 * H, H), jnp.float32, -stdv, stdv)
    b_ih = jax.random.uniform(k3, (3 * H,), jnp.float32, -stdv, stdv)
    b_hh = jax.random.uniform(k4, (3 * H,), jnp.float32, -stdv, stdv)
    return (w_ih, w_hh, b_ih, b_hh)


def _reference_gru_layer0(data, params, H):
    """Plain-JAX reference of the PyTorch GRU layer-0 recurrence, for verification."""
    w_ih, w_hh, b_ih, b_hh = params
    B, T, D = data.shape
    w_ir, w_iz, w_in = w_ih[:H], w_ih[H:2 * H], w_ih[2 * H:]
    w_hr, w_hz, w_hn = w_hh[:H], w_hh[H:2 * H], w_hh[2 * H:]
    b_ir, b_iz, b_in = b_ih[:H], b_ih[H:2 * H], b_ih[2 * H:]
    b_hr, b_hz, b_hn = b_hh[:H], b_hh[H:2 * H], b_hh[2 * H:]

    def step(h, x):
        r = jax.nn.sigmoid(x @ w_ir.T + b_ir + h @ w_hr.T + b_hr)
        z = jax.nn.sigmoid(x @ w_iz.T + b_iz + h @ w_hz.T + b_hz)
        n = jnp.tanh(x @ w_in.T + b_in + r * (h @ w_hn.T + b_hn))
        return (1.0 - z) * n + z * h, None

    h0 = jnp.zeros((B, H), jnp.float32)
    h_final, _ = lax.scan(step, h0, jnp.transpose(data, (1, 0, 2)))
    return h_final


if __name__ == "__main__":
    # Small shapes consistent with Context(input_dim=D, hidden_sizes=[H]) applied to (B, T, D).
    B, T, D, H = 2, 8, 12, 32

    key = jax.random.PRNGKey(0)
    k_data, k_params = jax.random.split(key)
    data = jax.random.normal(k_data, (B, T, D), dtype=jnp.float32)
    params = init_gru_layer0_params(k_params, D, H)

    out = context_forward(data, params, hidden_size=H)
    jax.block_until_ready(out)

    ref = _reference_gru_layer0(data, params, H)
    assert out.shape == (B, H)
    assert jnp.allclose(out, ref, atol=1e-4, rtol=1e-4), "Pallas GRU mismatch vs reference"

    print("KERNEL_OK")
</pallas_src>

<mosaic_0001>
module attributes {stable_mosaic.version = 11 : i64} {
  func.func @_gru_layer0_kernel(%arg0: i32, %arg1: memref<64x12xf32, #tpu.memory_space<vmem>>, %arg2: memref<12x384xf32, #tpu.memory_space<vmem>>, %arg3: memref<128x384xf32, #tpu.memory_space<vmem>>, %arg4: memref<1x384xf32, #tpu.memory_space<vmem>>, %arg5: memref<1x128xf32, #tpu.memory_space<vmem>>, %arg6: memref<8x128xf32, #tpu.memory_space<vmem>>, %arg7: memref<8x128xf32, #tpu.memory_space<vmem>>, %arg8: memref<64x384xf32, #tpu.memory_space<vmem>>) attributes {dimension_semantics = [#tpu.dimension_semantics<arbitrary>], iteration_bounds = array<i64: 1>, scalar_prefetch = 0 : i64, scratch_operands = 2 : i64, tpu.core_type = #tpu.core_type<tc>, window_params = [{transform_indices = @transform_0, window_bounds = array<i64: 64, 12>}, {pipeline_mode = #tpu.pipeline_mode<synchronous>, transform_indices = @transform_1, window_bounds = array<i64: 12, 384>}, {pipeline_mode = #tpu.pipeline_mode<synchronous>, transform_indices = @transform_2, window_bounds = array<i64: 128, 384>}, {pipeline_mode = #tpu.pipeline_mode<synchronous>, transform_indices = @transform_3, window_bounds = array<i64: 1, 384>}, {pipeline_mode = #tpu.pipeline_mode<synchronous>, transform_indices = @transform_4, window_bounds = array<i64: 1, 128>}, {pipeline_mode = #tpu.pipeline_mode<synchronous>, transform_indices = @transform_5, window_bounds = array<i64: 8, 128>}]} {
    %c0_i32 = arith.constant 0 : i32
    %0 = arith.cmpi eq, %arg0, %c0_i32 : i32
    %1 = arith.extui %0 : i1 to i32
    %c0_i32_0 = arith.constant 0 : i32
    %2 = arith.cmpi ne, %1, %c0_i32_0 : i32
    scf.if %2 {
      %cst_81 = arith.constant 0.000000e+00 : f32
      %282 = vector.broadcast %cst_81 : f32 to vector<8x128xf32>
      %c0_82 = arith.constant 0 : index
      %c0_83 = arith.constant 0 : index
      %283 = vector.load %arg7[%c0_82, %c0_83] : memref<8x128xf32, #tpu.memory_space<vmem>>, vector<8x128xf32>
      tpu.vector_store %arg7[%c0_82, %c0_83], %282 {strides = array<i32>} : memref<8x128xf32, #tpu.memory_space<vmem>>, vector<8x128xf32>,
    } else {
    }
    %c0 = arith.constant 0 : index
    %c0_1 = arith.constant 0 : index
    %3 = vector.load %arg1[%c0, %c0_1] : memref<64x12xf32, #tpu.memory_space<vmem>>, vector<64x12xf32>
    %c0_2 = arith.constant 0 : index
    %c0_3 = arith.constant 0 : index
    %4 = vector.load %arg2[%c0_2, %c0_3] : memref<12x384xf32, #tpu.memory_space<vmem>>, vector<12x384xf32>
    %cst = arith.constant dense<0.000000e+00> : vector<64x384xf32>
    %5 = tpu.matmul %3, %4, %cst {dimension_numbers = #tpu.dot_dimension_numbers<[1], [0], [0], [1], [0, 0, 1, 1], [], []>} : vector<64x12xf32>, vector<12x384xf32>, vector<64x384xf32> -> vector<64x384xf32>
    %c0_4 = arith.constant 0 : index
    %c0_5 = arith.constant 0 : index
    %6 = vector.load %arg4[%c0_4, %c0_5] : memref<1x384xf32, #tpu.memory_space<vmem>>, vector<1x384xf32>
    %7 = vector.broadcast %6 : vector<1x384xf32> to vector<64x384xf32>
    %8 = arith.addf %5, %7 : vector<64x384xf32>
    %c0_6 = arith.constant 0 : index
    %c0_7 = arith.constant 0 : index
    %9 = vector.load %arg8[%c0_6, %c0_7] : memref<64x384xf32, #tpu.memory_space<vmem>>, vector<64x384xf32>
    tpu.vector_store %arg8[%c0_6, %c0_7], %8 {strides = array<i32>} : memref<64x384xf32, #tpu.memory_space<vmem>>, vector<64x384xf32>,
    %c0_8 = arith.constant 0 : index
    %c0_9 = arith.constant 0 : index
    %10 = vector.load %arg5[%c0_8, %c0_9] : memref<1x128xf32, #tpu.memory_space<vmem>>, vector<1x128xf32>
    %11 = vector.shape_cast %10 : vector<1x128xf32> to vector<1x128xf32>
    %12 = vector.broadcast %11 : vector<1x128xf32> to vector<8x128xf32>
    %c0_10 = arith.constant 0 : index
    %c0_11 = arith.constant 0 : index
    %13 = vector.load %arg7[%c0_10, %c0_11] : memref<8x128xf32, #tpu.memory_space<vmem>>, vector<8x128xf32>
    %c0_i32_12 = arith.constant 0 : i32
    %c8_i32 = arith.constant 8 : i32
    %14 = arith.muli %c0_i32_12, %c8_i32 : i32
    %15 = tpu.assume_multiple %14, 8 : i32
    %16 = arith.index_cast %15 : i32 to index
    %c0_13 = arith.constant 0 : index
    %17 = vector.load %arg8[%16, %c0_13] : memref<64x384xf32, #tpu.memory_space<vmem>>, vector<8x384xf32>
    %c0_14 = arith.constant 0 : index
    %c0_15 = arith.constant 0 : index
    %18 = vector.load %arg3[%c0_14, %c0_15] : memref<128x384xf32, #tpu.memory_space<vmem>>, vector<128x384xf32>
    %cst_16 = arith.constant dense<0.000000e+00> : vector<8x384xf32>
    %19 = tpu.matmul %13, %18, %cst_16 {dimension_numbers = #tpu.dot_dimension_numbers<[1], [0], [0], [1], [0, 0, 1, 1], [], []>} : vector<8x128xf32>, vector<128x384xf32>, vector<8x384xf32> -> vector<8x384xf32>
    %20 = vector.extract_strided_slice %17 {offsets = [0, 0], sizes = [8, 128], strides = [1, 1]} : vector<8x384xf32> to vector<8x128xf32>
    %21 = vector.extract_strided_slice %19 {offsets = [0, 0], sizes = [8, 128], strides = [1, 1]} : vector<8x384xf32> to vector<8x128xf32>
    %22 = arith.addf %20, %21 : vector<8x128xf32>
    %23 = arith.negf %22 : vector<8x128xf32>
    %24 = math.exp %23 : vector<8x128xf32>
    %cst_17 = arith.constant 1.000000e+00 : f32
    %25 = vector.broadcast %cst_17 : f32 to vector<8x128xf32>
    %26 = arith.addf %25, %24 : vector<8x128xf32>
    %27 = arith.divf %25, %26 : vector<8x128xf32>
    %28 = vector.extract_strided_slice %17 {offsets = [0, 128], sizes = [8, 128], strides = [1, 1]} : vector<8x384xf32> to vector<8x128xf32>
    %29 = vector.extract_strided_slice %19 {offsets = [0, 128], sizes = [8, 128], strides = [1, 1]} : vector<8x384xf32> to vector<8x128xf32>
    %30 = arith.addf %28, %29 : vector<8x128xf32>
    %31 = arith.negf %30 : vector<8x128xf32>
    %32 = math.exp %31 : vector<8x128xf32>
    %cst_18 = arith.constant 1.000000e+00 : f32
    %33 = vector.broadcast %cst_18 : f32 to vector<8x128xf32>
    %34 = arith.addf %33, %32 : vector<8x128xf32>
    %35 = arith.divf %33, %34 : vector<8x128xf32>
    %36 = vector.extract_strided_slice %17 {offsets = [0, 256], sizes = [8, 128], strides = [1, 1]} : vector<8x384xf32> to vector<8x128xf32>
    %37 = vector.extract_strided_slice %19 {offsets = [0, 256], sizes = [8, 128], strides = [1, 1]} : vector<8x384xf32> to vector<8x128xf32>
    %38 = arith.addf %37, %12 : vector<8x128xf32>
    %39 = arith.mulf %27, %38 : vector<8x128xf32>
    %40 = arith.addf %36, %39 : vector<8x128xf32>
    %41 = math.tanh %40 : vector<8x128xf32>
    %cst_19 = arith.constant 1.000000e+00 : f32
    %42 = vector.broadcast %cst_19 : f32 to vector<8x128xf32>
    %43 = arith.subf %42, %35 : vector<8x128xf32>
    %44 = arith.mulf %43, %41 : vector<8x128xf32>
    %45 = arith.mulf %35, %13 : vector<8x128xf32>
    %46 = arith.addf %44, %45 : vector<8x128xf32>
    %c1_i32 = arith.constant 1 : i32
    %c8_i32_20 = arith.constant 8 : i32
    %47 = arith.muli %c1_i32, %c8_i32_20 : i32
    %48 = tpu.assume_multiple %47, 8 : i32
    %49 = arith.index_cast %48 : i32 to index
    %c0_21 = arith.constant 0 : index
    %50 = vector.load %arg8[%49, %c0_21] : memref<64x384xf32, #tpu.memory_space<vmem>>, vector<8x384xf32>
    %c0_22 = arith.constant 0 : index
    %c0_23 = arith.constant 0 : index
    %51 = vector.load %arg3[%c0_22, %c0_23] : memref<128x384xf32, #tpu.memory_space<vmem>>, vector<128x384xf32>
    %cst_24 = arith.constant dense<0.000000e+00> : vector<8x384xf32>
    %52 = tpu.matmul %46, %51, %cst_24 {dimension_numbers = #tpu.dot_dimension_numbers<[1], [0], [0], [1], [0, 0, 1, 1], [], []>} : vector<8x128xf32>, vector<128x384xf32>, vector<8x384xf32> -> vector<8x384xf32>
    %53 = vector.extract_strided_slice %50 {offsets = [0, 0], sizes = [8, 128], strides = [1, 1]} : vector<8x384xf32> to vector<8x128xf32>
    %54 = vector.extract_strided_slice %52 {offsets = [0, 0], sizes = [8, 128], strides = [1, 1]} : vector<8x384xf32> to vector<8x128xf32>
    %55 = arith.addf %53, %54 : vector<8x128xf32>
    %56 = arith.negf %55 : vector<8x128xf32>
    %57 = math.exp %56 : vector<8x128xf32>
    %cst_25 = arith.constant 1.000000e+00 : f32
    %58 = vector.broadcast %cst_25 : f32 to vector<8x128xf32>
    %59 = arith.addf %58, %57 : vector<8x128xf32>
    %60 = arith.divf %58, %59 : vector<8x128xf32>
    %61 = vector.extract_strided_slice %50 {offsets = [0, 128], sizes = [8, 128], strides = [1, 1]} : vector<8x384xf32> to vector<8x128xf32>
    %62 = vector.extract_strided_slice %52 {offsets = [0, 128], sizes = [8, 128], strides = [1, 1]} : vector<8x384xf32> to vector<8x128xf32>
    %63 = arith.addf %61, %62 : vector<8x128xf32>
    %64 = arith.negf %63 : vector<8x128xf32>
    %65 = math.exp %64 : vector<8x128xf32>
    %cst_26 = arith.constant 1.000000e+00 : f32
    %66 = vector.broadcast %cst_26 : f32 to vector<8x128xf32>
    %67 = arith.addf %66, %65 : vector<8x128xf32>
    %68 = arith.divf %66, %67 : vector<8x128xf32>
    %69 = vector.extract_strided_slice %50 {offsets = [0, 256], sizes = [8, 128], strides = [1, 1]} : vector<8x384xf32> to vector<8x128xf32>
    %70 = vector.extract_strided_slice %52 {offsets = [0, 256], sizes = [8, 128], strides = [1, 1]} : vector<8x384xf32> to vector<8x128xf32>
    %71 = arith.addf %70, %12 : vector<8x128xf32>
    %72 = arith.mulf %60, %71 : vector<8x128xf32>
    %73 = arith.addf %69, %72 : vector<8x128xf32>
    %74 = math.tanh %73 : vector<8x128xf32>
    %cst_27 = arith.constant 1.000000e+00 : f32
    %75 = vector.broadcast %cst_27 : f32 to vector<8x128xf32>
    %76 = arith.subf %75, %68 : vector<8x128xf32>
    %77 = arith.mulf %76, %74 : vector<8x128xf32>
    %78 = arith.mulf %68, %46 : vector<8x128xf32>
    %79 = arith.addf %77, %78 : vector<8x128xf32>
    %c2_i32 = arith.constant 2 : i32
    %c8_i32_28 = arith.constant 8 : i32
    %80 = arith.muli %c2_i32, %c8_i32_28 : i32
    %81 = tpu.assume_multiple %80, 8 : i32
    %82 = arith.index_cast %81 : i32 to index
    %c0_29 = arith.constant 0 : index
    %83 = vector.load %arg8[%82, %c0_29] : memref<64x384xf32, #tpu.memory_space<vmem>>, vector<8x384xf32>
    %c0_30 = arith.constant 0 : index
    %c0_31 = arith.constant 0 : index
    %84 = vector.load %arg3[%c0_30, %c0_31] : memref<128x384xf32, #tpu.memory_space<vmem>>, vector<128x384xf32>
    %cst_32 = arith.constant dense<0.000000e+00> : vector<8x384xf32>
    %85 = tpu.matmul %79, %84, %cst_32 {dimension_numbers = #tpu.dot_dimension_numbers<[1], [0], [0], [1], [0, 0, 1, 1], [], []>} : vector<8x128xf32>, vector<128x384xf32>, vector<8x384xf32> -> vector<8x384xf32>
    %86 = vector.extract_strided_slice %83 {offsets = [0, 0], sizes = [8, 128], strides = [1, 1]} : vector<8x384xf32> to vector<8x128xf32>
    %87 = vector.extract_strided_slice %85 {offsets = [0, 0], sizes = [8, 128], strides = [1, 1]} : vector<8x384xf32> to vector<8x128xf32>
    %88 = arith.addf %86, %87 : vector<8x128xf32>
    %89 = arith.negf %88 : vector<8x128xf32>
    %90 = math.exp %89 : vector<8x128xf32>
    %cst_33 = arith.constant 1.000000e+00 : f32
    %91 = vector.broadcast %cst_33 : f32 to vector<8x128xf32>
    %92 = arith.addf %91, %90 : vector<8x128xf32>
    %93 = arith.divf %91, %92 : vector<8x128xf32>
    %94 = vector.extract_strided_slice %83 {offsets = [0, 128], sizes = [8, 128], strides = [1, 1]} : vector<8x384xf32> to vector<8x128xf32>
    %95 = vector.extract_strided_slice %85 {offsets = [0, 128], sizes = [8, 128], strides = [1, 1]} : vector<8x384xf32> to vector<8x128xf32>
    %96 = arith.addf %94, %95 : vector<8x128xf32>
    %97 = arith.negf %96 : vector<8x128xf32>
    %98 = math.exp %97 : vector<8x128xf32>
    %cst_34 = arith.constant 1.000000e+00 : f32
    %99 = vector.broadcast %cst_34 : f32 to vector<8x128xf32>
    %100 = arith.addf %99, %98 : vector<8x128xf32>
    %101 = arith.divf %99, %100 : vector<8x128xf32>
    %102 = vector.extract_strided_slice %83 {offsets = [0, 256], sizes = [8, 128], strides = [1, 1]} : vector<8x384xf32> to vector<8x128xf32>
    %103 = vector.extract_strided_slice %85 {offsets = [0, 256], sizes = [8, 128], strides = [1, 1]} : vector<8x384xf32> to vector<8x128xf32>
    %104 = arith.addf %103, %12 : vector<8x128xf32>
    %105 = arith.mulf %93, %104 : vector<8x128xf32>
    %106 = arith.addf %102, %105 : vector<8x128xf32>
    %107 = math.tanh %106 : vector<8x128xf32>
    %cst_35 = arith.constant 1.000000e+00 : f32
    %108 = vector.broadcast %cst_35 : f32 to vector<8x128xf32>
    %109 = arith.subf %108, %101 : vector<8x128xf32>
    %110 = arith.mulf %109, %107 : vector<8x128xf32>
    %111 = arith.mulf %101, %79 : vector<8x128xf32>
    %112 = arith.addf %110, %111 : vector<8x128xf32>
    %c3_i32 = arith.constant 3 : i32
    %c8_i32_36 = arith.constant 8 : i32
    %113 = arith.muli %c3_i32, %c8_i32_36 : i32
    %114 = tpu.assume_multiple %113, 8 : i32
    %115 = arith.index_cast %114 : i32 to index
    %c0_37 = arith.constant 0 : index
    %116 = vector.load %arg8[%115, %c0_37] : memref<64x384xf32, #tpu.memory_space<vmem>>, vector<8x384xf32>
    %c0_38 = arith.constant 0 : index
    %c0_39 = arith.constant 0 : index
    %117 = vector.load %arg3[%c0_38, %c0_39] : memref<128x384xf32, #tpu.memory_space<vmem>>, vector<128x384xf32>
    %cst_40 = arith.constant dense<0.000000e+00> : vector<8x384xf32>
    %118 = tpu.matmul %112, %117, %cst_40 {dimension_numbers = #tpu.dot_dimension_numbers<[1], [0], [0], [1], [0, 0, 1, 1], [], []>} : vector<8x128xf32>, vector<128x384xf32>, vector<8x384xf32> -> vector<8x384xf32>
    %119 = vector.extract_strided_slice %116 {offsets = [0, 0], sizes = [8, 128], strides = [1, 1]} : vector<8x384xf32> to vector<8x128xf32>
    %120 = vector.extract_strided_slice %118 {offsets = [0, 0], sizes = [8, 128], strides = [1, 1]} : vector<8x384xf32> to vector<8x128xf32>
    %121 = arith.addf %119, %120 : vector<8x128xf32>
    %122 = arith.negf %121 : vector<8x128xf32>
    %123 = math.exp %122 : vector<8x128xf32>
    %cst_41 = arith.constant 1.000000e+00 : f32
    %124 = vector.broadcast %cst_41 : f32 to vector<8x128xf32>
    %125 = arith.addf %124, %123 : vector<8x128xf32>
    %126 = arith.divf %124, %125 : vector<8x128xf32>
    %127 = vector.extract_strided_slice %116 {offsets = [0, 128], sizes = [8, 128], strides = [1, 1]} : vector<8x384xf32> to vector<8x128xf32>
    %128 = vector.extract_strided_slice %118 {offsets = [0, 128], sizes = [8, 128], strides = [1, 1]} : vector<8x384xf32> to vector<8x128xf32>
    %129 = arith.addf %127, %128 : vector<8x128xf32>
    %130 = arith.negf %129 : vector<8x128xf32>
    %131 = math.exp %130 : vector<8x128xf32>
    %cst_42 = arith.constant 1.000000e+00 : f32
    %132 = vector.broadcast %cst_42 : f32 to vector<8x128xf32>
    %133 = arith.addf %132, %131 : vector<8x128xf32>
    %134 = arith.divf %132, %133 : vector<8x128xf32>
    %135 = vector.extract_strided_slice %116 {offsets = [0, 256], sizes = [8, 128], strides = [1, 1]} : vector<8x384xf32> to vector<8x128xf32>
    %136 = vector.extract_strided_slice %118 {offsets = [0, 256], sizes = [8, 128], strides = [1, 1]} : vector<8x384xf32> to vector<8x128xf32>
    %137 = arith.addf %136, %12 : vector<8x128xf32>
    %138 = arith.mulf %126, %137 : vector<8x128xf32>
    %139 = arith.addf %135, %138 : vector<8x128xf32>
    %140 = math.tanh %139 : vector<8x128xf32>
    %cst_43 = arith.constant 1.000000e+00 : f32
    %141 = vector.broadcast %cst_43 : f32 to vector<8x128xf32>
    %142 = arith.subf %141, %134 : vector<8x128xf32>
    %143 = arith.mulf %142, %140 : vector<8x128xf32>
    %144 = arith.mulf %134, %112 : vector<8x128xf32>
    %145 = arith.addf %143, %144 : vector<8x128xf32>
    %c4_i32 = arith.constant 4 : i32
    %c8_i32_44 = arith.constant 8 : i32
    %146 = arith.muli %c4_i32, %c8_i32_44 : i32
    %147 = tpu.assume_multiple %146, 8 : i32
    %148 = arith.index_cast %147 : i32 to index
    %c0_45 = arith.constant 0 : index
    %149 = vector.load %arg8[%148, %c0_45] : memref<64x384xf32, #tpu.memory_space<vmem>>, vector<8x384xf32>
    %c0_46 = arith.constant 0 : index
    %c0_47 = arith.constant 0 : index
    %150 = vector.load %arg3[%c0_46, %c0_47] : memref<128x384xf32, #tpu.memory_space<vmem>>, vector<128x384xf32>
    %cst_48 = arith.constant dense<0.000000e+00> : vector<8x384xf32>
    %151 = tpu.matmul %145, %150, %cst_48 {dimension_numbers = #tpu.dot_dimension_numbers<[1], [0], [0], [1], [0, 0, 1, 1], [], []>} : vector<8x128xf32>, vector<128x384xf32>, vector<8x384xf32> -> vector<8x384xf32>
    %152 = vector.extract_strided_slice %149 {offsets = [0, 0], sizes = [8, 128], strides = [1, 1]} : vector<8x384xf32> to vector<8x128xf32>
    %153 = vector.extract_strided_slice %151 {offsets = [0, 0], sizes = [8, 128], strides = [1, 1]} : vector<8x384xf32> to vector<8x128xf32>
    %154 = arith.addf %152, %153 : vector<8x128xf32>
    %155 = arith.negf %154 : vector<8x128xf32>
    %156 = math.exp %155 : vector<8x128xf32>
    %cst_49 = arith.constant 1.000000e+00 : f32
    %157 = vector.broadcast %cst_49 : f32 to vector<8x128xf32>
    %158 = arith.addf %157, %156 : vector<8x128xf32>
    %159 = arith.divf %157, %158 : vector<8x128xf32>
    %160 = vector.extract_strided_slice %149 {offsets = [0, 128], sizes = [8, 128], strides = [1, 1]} : vector<8x384xf32> to vector<8x128xf32>
    %161 = vector.extract_strided_slice %151 {offsets = [0, 128], sizes = [8, 128], strides = [1, 1]} : vector<8x384xf32> to vector<8x128xf32>
    %162 = arith.addf %160, %161 : vector<8x128xf32>
    %163 = arith.negf %162 : vector<8x128xf32>
    %164 = math.exp %163 : vector<8x128xf32>
    %cst_50 = arith.constant 1.000000e+00 : f32
    %165 = vector.broadcast %cst_50 : f32 to vector<8x128xf32>
    %166 = arith.addf %165, %164 : vector<8x128xf32>
    %167 = arith.divf %165, %166 : vector<8x128xf32>
    %168 = vector.extract_strided_slice %149 {offsets = [0, 256], sizes = [8, 128], strides = [1, 1]} : vector<8x384xf32> to vector<8x128xf32>
    %169 = vector.extract_strided_slice %151 {offsets = [0, 256], sizes = [8, 128], strides = [1, 1]} : vector<8x384xf32> to vector<8x128xf32>
    %170 = arith.addf %169, %12 : vector<8x128xf32>
    %171 = arith.mulf %159, %170 : vector<8x128xf32>
    %172 = arith.addf %168, %171 : vector<8x128xf32>
    %173 = math.tanh %172 : vector<8x128xf32>
    %cst_51 = arith.constant 1.000000e+00 : f32
    %174 = vector.broadcast %cst_51 : f32 to vector<8x128xf32>
    %175 = arith.subf %174, %167 : vector<8x128xf32>
    %176 = arith.mulf %175, %173 : vector<8x128xf32>
    %177 = arith.mulf %167, %145 : vector<8x128xf32>
    %178 = arith.addf %176, %177 : vector<8x128xf32>
    %c5_i32 = arith.constant 5 : i32
    %c8_i32_52 = arith.constant 8 : i32
    %179 = arith.muli %c5_i32, %c8_i32_52 : i32
    %180 = tpu.assume_multiple %179, 8 : i32
    %181 = arith.index_cast %180 : i32 to index
    %c0_53 = arith.constant 0 : index
    %182 = vector.load %arg8[%181, %c0_53] : memref<64x384xf32, #tpu.memory_space<vmem>>, vector<8x384xf32>
    %c0_54 = arith.constant 0 : index
    %c0_55 = arith.constant 0 : index
    %183 = vector.load %arg3[%c0_54, %c0_55] : memref<128x384xf32, #tpu.memory_space<vmem>>, vector<128x384xf32>
    %cst_56 = arith.constant dense<0.000000e+00> : vector<8x384xf32>
    %184 = tpu.matmul %178, %183, %cst_56 {dimension_numbers = #tpu.dot_dimension_numbers<[1], [0], [0], [1], [0, 0, 1, 1], [], []>} : vector<8x128xf32>, vector<128x384xf32>, vector<8x384xf32> -> vector<8x384xf32>
    %185 = vector.extract_strided_slice %182 {offsets = [0, 0], sizes = [8, 128], strides = [1, 1]} : vector<8x384xf32> to vector<8x128xf32>
    %186 = vector.extract_strided_slice %184 {offsets = [0, 0], sizes = [8, 128], strides = [1, 1]} : vector<8x384xf32> to vector<8x128xf32>
    %187 = arith.addf %185, %186 : vector<8x128xf32>
    %188 = arith.negf %187 : vector<8x128xf32>
    %189 = math.exp %188 : vector<8x128xf32>
    %cst_57 = arith.constant 1.000000e+00 : f32
    %190 = vector.broadcast %cst_57 : f32 to vector<8x128xf32>
    %191 = arith.addf %190, %189 : vector<8x128xf32>
    %192 = arith.divf %190, %191 : vector<8x128xf32>
    %193 = vector.extract_strided_slice %182 {offsets = [0, 128], sizes = [8, 128], strides = [1, 1]} : vector<8x384xf32> to vector<8x128xf32>
    %194 = vector.extract_strided_slice %184 {offsets = [0, 128], sizes = [8, 128], strides = [1, 1]} : vector<8x384xf32> to vector<8x128xf32>
    %195 = arith.addf %193, %194 : vector<8x128xf32>
    %196 = arith.negf %195 : vector<8x128xf32>
    %197 = math.exp %196 : vector<8x128xf32>
    %cst_58 = arith.constant 1.000000e+00 : f32
    %198 = vector.broadcast %cst_58 : f32 to vector<8x128xf32>
    %199 = arith.addf %198, %197 : vector<8x128xf32>
    %200 = arith.divf %198, %199 : vector<8x128xf32>
    %201 = vector.extract_strided_slice %182 {offsets = [0, 256], sizes = [8, 128], strides = [1, 1]} : vector<8x384xf32> to vector<8x128xf32>
    %202 = vector.extract_strided_slice %184 {offsets = [0, 256], sizes = [8, 128], strides = [1, 1]} : vector<8x384xf32> to vector<8x128xf32>
    %203 = arith.addf %202, %12 : vector<8x128xf32>
    %204 = arith.mulf %192, %203 : vector<8x128xf32>
    %205 = arith.addf %201, %204 : vector<8x128xf32>
    %206 = math.tanh %205 : vector<8x128xf32>
    %cst_59 = arith.constant 1.000000e+00 : f32
    %207 = vector.broadcast %cst_59 : f32 to vector<8x128xf32>
    %208 = arith.subf %207, %200 : vector<8x128xf32>
    %209 = arith.mulf %208, %206 : vector<8x128xf32>
    %210 = arith.mulf %200, %178 : vector<8x128xf32>
    %211 = arith.addf %209, %210 : vector<8x128xf32>
    %c6_i32 = arith.constant 6 : i32
    %c8_i32_60 = arith.constant 8 : i32
    %212 = arith.muli %c6_i32, %c8_i32_60 : i32
    %213 = tpu.assume_multiple %212, 8 : i32
    %214 = arith.index_cast %213 : i32 to index
    %c0_61 = arith.constant 0 : index
    %215 = vector.load %arg8[%214, %c0_61] : memref<64x384xf32, #tpu.memory_space<vmem>>, vector<8x384xf32>
    %c0_62 = arith.constant 0 : index
    %c0_63 = arith.constant 0 : index
    %216 = vector.load %arg3[%c0_62, %c0_63] : memref<128x384xf32, #tpu.memory_space<vmem>>, vector<128x384xf32>
    %cst_64 = arith.constant dense<0.000000e+00> : vector<8x384xf32>
    %217 = tpu.matmul %211, %216, %cst_64 {dimension_numbers = #tpu.dot_dimension_numbers<[1], [0], [0], [1], [0, 0, 1, 1], [], []>} : vector<8x128xf32>, vector<128x384xf32>, vector<8x384xf32> -> vector<8x384xf32>
    %218 = vector.extract_strided_slice %215 {offsets = [0, 0], sizes = [8, 128], strides = [1, 1]} : vector<8x384xf32> to vector<8x128xf32>
    %219 = vector.extract_strided_slice %217 {offsets = [0, 0], sizes = [8, 128], strides = [1, 1]} : vector<8x384xf32> to vector<8x128xf32>
    %220 = arith.addf %218, %219 : vector<8x128xf32>
    %221 = arith.negf %220 : vector<8x128xf32>
    %222 = math.exp %221 : vector<8x128xf32>
    %cst_65 = arith.constant 1.000000e+00 : f32
    %223 = vector.broadcast %cst_65 : f32 to vector<8x128xf32>
    %224 = arith.addf %223, %222 : vector<8x128xf32>
    %225 = arith.divf %223, %224 : vector<8x128xf32>
    %226 = vector.extract_strided_slice %215 {offsets = [0, 128], sizes = [8, 128], strides = [1, 1]} : vector<8x384xf32> to vector<8x128xf32>
    %227 = vector.extract_strided_slice %217 {offsets = [0, 128], sizes = [8, 128], strides = [1, 1]} : vector<8x384xf32> to vector<8x128xf32>
    %228 = arith.addf %226, %227 : vector<8x128xf32>
    %229 = arith.negf %228 : vector<8x128xf32>
    %230 = math.exp %229 : vector<8x128xf32>
    %cst_66 = arith.constant 1.000000e+00 : f32
    %231 = vector.broadcast %cst_66 : f32 to vector<8x128xf32>
    %232 = arith.addf %231, %230 : vector<8x128xf32>
    %233 = arith.divf %231, %232 : vector<8x128xf32>
    %234 = vector.extract_strided_slice %215 {offsets = [0, 256], sizes = [8, 128], strides = [1, 1]} : vector<8x384xf32> to vector<8x128xf32>
    %235 = vector.extract_strided_slice %217 {offsets = [0, 256], sizes = [8, 128], strides = [1, 1]} : vector<8x384xf32> to vector<8x128xf32>
    %236 = arith.addf %235, %12 : vector<8x128xf32>
    %237 = arith.mulf %225, %236 : vector<8x128xf32>
    %238 = arith.addf %234, %237 : vector<8x128xf32>
    %239 = math.tanh %238 : vector<8x128xf32>
    %cst_67 = arith.constant 1.000000e+00 : f32
    %240 = vector.broadcast %cst_67 : f32 to vector<8x128xf32>
    %241 = arith.subf %240, %233 : vector<8x128xf32>
    %242 = arith.mulf %241, %239 : vector<8x128xf32>
    %243 = arith.mulf %233, %211 : vector<8x128xf32>
    %244 = arith.addf %242, %243 : vector<8x128xf32>
    %c7_i32 = arith.constant 7 : i32
    %c8_i32_68 = arith.constant 8 : i32
    %245 = arith.muli %c7_i32, %c8_i32_68 : i32
    %246 = tpu.assume_multiple %245, 8 : i32
    %247 = arith.index_cast %246 : i32 to index
    %c0_69 = arith.constant 0 : index
    %248 = vector.load %arg8[%247, %c0_69] : memref<64x384xf32, #tpu.memory_space<vmem>>, vector<8x384xf32>
    %c0_70 = arith.constant 0 : index
    %c0_71 = arith.constant 0 : index
    %249 = vector.load %arg3[%c0_70, %c0_71] : memref<128x384xf32, #tpu.memory_space<vmem>>, vector<128x384xf32>
    %cst_72 = arith.constant dense<0.000000e+00> : vector<8x384xf32>
    %250 = tpu.matmul %244, %249, %cst_72 {dimension_numbers = #tpu.dot_dimension_numbers<[1], [0], [0], [1], [0, 0, 1, 1], [], []>} : vector<8x128xf32>, vector<128x384xf32>, vector<8x384xf32> -> vector<8x384xf32>
    %251 = vector.extract_strided_slice %248 {offsets = [0, 0], sizes = [8, 128], strides = [1, 1]} : vector<8x384xf32> to vector<8x128xf32>
    %252 = vector.extract_strided_slice %250 {offsets = [0, 0], sizes = [8, 128], strides = [1, 1]} : vector<8x384xf32> to vector<8x128xf32>
    %253 = arith.addf %251, %252 : vector<8x128xf32>
    %254 = arith.negf %253 : vector<8x128xf32>
    %255 = math.exp %254 : vector<8x128xf32>
    %cst_73 = arith.constant 1.000000e+00 : f32
    %256 = vector.broadcast %cst_73 : f32 to vector<8x128xf32>
    %257 = arith.addf %256, %255 : vector<8x128xf32>
    %258 = arith.divf %256, %257 : vector<8x128xf32>
    %259 = vector.extract_strided_slice %248 {offsets = [0, 128], sizes = [8, 128], strides = [1, 1]} : vector<8x384xf32> to vector<8x128xf32>
    %260 = vector.extract_strided_slice %250 {offsets = [0, 128], sizes = [8, 128], strides = [1, 1]} : vector<8x384xf32> to vector<8x128xf32>
    %261 = arith.addf %259, %260 : vector<8x128xf32>
    %262 = arith.negf %261 : vector<8x128xf32>
    %263 = math.exp %262 : vector<8x128xf32>
    %cst_74 = arith.constant 1.000000e+00 : f32
    %264 = vector.broadcast %cst_74 : f32 to vector<8x128xf32>
    %265 = arith.addf %264, %263 : vector<8x128xf32>
    %266 = arith.divf %264, %265 : vector<8x128xf32>
    %267 = vector.extract_strided_slice %248 {offsets = [0, 256], sizes = [8, 128], strides = [1, 1]} : vector<8x384xf32> to vector<8x128xf32>
    %268 = vector.extract_strided_slice %250 {offsets = [0, 256], sizes = [8, 128], strides = [1, 1]} : vector<8x384xf32> to vector<8x128xf32>
    %269 = arith.addf %268, %12 : vector<8x128xf32>
    %270 = arith.mulf %258, %269 : vector<8x128xf32>
    %271 = arith.addf %267, %270 : vector<8x128xf32>
    %272 = math.tanh %271 : vector<8x128xf32>
    %cst_75 = arith.constant 1.000000e+00 : f32
    %273 = vector.broadcast %cst_75 : f32 to vector<8x128xf32>
    %274 = arith.subf %273, %266 : vector<8x128xf32>
    %275 = arith.mulf %274, %272 : vector<8x128xf32>
    %276 = arith.mulf %266, %244 : vector<8x128xf32>
    %277 = arith.addf %275, %276 : vector<8x128xf32>
    %c8_i32_76 = arith.constant 8 : i32
    %c0_77 = arith.constant 0 : index
    %c0_78 = arith.constant 0 : index
    %278 = vector.load %arg7[%c0_77, %c0_78] : memref<8x128xf32, #tpu.memory_space<vmem>>, vector<8x128xf32>
    tpu.vector_store %arg7[%c0_77, %c0_78], %277 {strides = array<i32>} : memref<8x128xf32, #tpu.memory_space<vmem>>, vector<8x128xf32>,
    %c0_i32_79 = arith.constant 0 : i32
    %279 = arith.cmpi eq, %arg0, %c0_i32_79 : i32
    %280 = arith.extui %279 : i1 to i32
    %c0_i32_80 = arith.constant 0 : i32
    %281 = arith.cmpi ne, %280, %c0_i32_80 : i32
    scf.if %281 {
      %c0_81 = arith.constant 0 : index
      %c0_82 = arith.constant 0 : index
      %282 = vector.load %arg7[%c0_81, %c0_82] : memref<8x128xf32, #tpu.memory_space<vmem>>, vector<8x128xf32>
      %c0_83 = arith.constant 0 : index
      %c0_84 = arith.constant 0 : index
      %283 = vector.load %arg6[%c0_83, %c0_84] : memref<8x128xf32, #tpu.memory_space<vmem>>, vector<8x128xf32>
      tpu.vector_store %arg6[%c0_83, %c0_84], %282 {strides = array<i32>} : memref<8x128xf32, #tpu.memory_space<vmem>>, vector<8x128xf32>,
    } else {
    }
    return
  }
  func.func @transform_0(%arg0: i32) -> (i32, i32) {
    %c0_i32 = arith.constant 0 : i32
    %c0_i32_0 = arith.constant 0 : i32
    return %arg0, %c0_i32 : i32, i32
  }
  func.func @transform_1(%arg0: i32) -> (i32, i32) {
    %c0_i32 = arith.constant 0 : i32
    %c0_i32_0 = arith.constant 0 : i32
    %c0_i32_1 = arith.constant 0 : i32
    return %c0_i32, %c0_i32_0 : i32, i32
  }
  func.func @transform_2(%arg0: i32) -> (i32, i32) {
    %c0_i32 = arith.constant 0 : i32
    %c0_i32_0 = arith.constant 0 : i32
    %c0_i32_1 = arith.constant 0 : i32
    return %c0_i32, %c0_i32_0 : i32, i32
  }
  func.func @transform_3(%arg0: i32) -> (i32, i32) {
    %c0_i32 = arith.constant 0 : i32
    %c0_i32_0 = arith.constant 0 : i32
    %c0_i32_1 = arith.constant 0 : i32
    return %c0_i32, %c0_i32_0 : i32, i32
  }
  func.func @transform_4(%arg0: i32) -> (i32, i32) {
    %c0_i32 = arith.constant 0 : i32
    %c0_i32_0 = arith.constant 0 : i32
    %c0_i32_1 = arith.constant 0 : i32
    return %c0_i32, %c0_i32_0 : i32, i32
  }
  func.func @transform_5(%arg0: i32) -> (i32, i32) {
    %c0_i32 = arith.constant 0 : i32
    %c0_i32_0 = arith.constant 0 : i32
    %c0_i32_1 = arith.constant 0 : i32
    return %c0_i32, %c0_i32_0 : i32, i32
  }
}

</mosaic_0001>

<llo_original>
// kernel: context_forward.1
$region0: #{context_forward.1}
  #allocation0 [shape = 'u32[]', space=smem, size = 0x4, offset = 0x4, fixed_abs, tag = 'smem constant byte address 0x4 - core index']
  #allocation1 [shape = 'u32[144,128]{1,0:T(1,128)}', space=vmem, size = 0x12000, scoped, tag = 'internal scratch']
  #allocation2 [shape = 'f32[8,128]{1,0:T(8,128)}', space=vmem, size = 0x1000, scoped, tag = 'scratch operand']
  #allocation3 [shape = 'f32[64,384]{1,0:T(8,128)}', space=vmem, size = 0x18000, scoped, tag = 'scratch operand']
  %s0 = inlined_call_operand.vmem [shape: f32[64,12], index: 0, kind: input, shape index: {}]
  %s1 = inlined_call_operand.vmem [shape: f32[12,384], index: 1, kind: input, shape index: {}]
  %s2 = inlined_call_operand.vmem [shape: f32[128,384], index: 2, kind: input, shape index: {}]
  %s3 = inlined_call_operand.vmem [shape: f32[1,384], index: 3, kind: input, shape index: {}]
  %s4 = inlined_call_operand.vmem [shape: f32[1,128], index: 4, kind: input, shape index: {}]
  %s5 = inlined_call_operand.vmem [shape: f32[8,128], index: 5, kind: output, shape index: {}]
  %s6 = sld [smem:[#allocation0]]
  $region38: #{context_forward.1} parent=0
    _
  %s8 = ssub.s32 1, %s6
  %s9 = scalar_select 0, %s8, %s6
  // Predicated region
  $region2: #{context_forward.1} parent=0 // pred_check
    _
  $region3: #{context_forward.1} parent=0 // pred_check_branch
    %11 = sbr.rel (0) target = $region5
  $region4: #{context_forward.1} parent=0 // pred_region
    _
  $region5: #{context_forward.1} parent=0 // pred_fallthru
    _
  // Predicated region
  $region6: #{context_forward.1} parent=0 // pred_check
    _
  $region7: #{context_forward.1} parent=0 // pred_check_branch
    %13 = sbr.rel (0) target = $region9
  $region8: #{context_forward.1} parent=0 // pred_region
    _
  $region9: #{context_forward.1} parent=0 // pred_fallthru
    _
  // Predicated region
  $region10: #{context_forward.1} parent=0 // pred_check
    _
  $region11: #{context_forward.1} parent=0 // pred_check_branch
    %15 = sbr.rel (0) target = $region13
  $region12: #{context_forward.1} parent=0 // pred_region
    _
  $region13: #{context_forward.1} parent=0 // pred_fallthru
    _
  // Predicated region
  $region14: #{context_forward.1} parent=0 // pred_check
    _
  $region15: #{context_forward.1} parent=0 // pred_check_branch
    %17 = sbr.rel (0) target = $region17
  $region16: #{context_forward.1} parent=0 // pred_region
    _
  $region17: #{context_forward.1} parent=0 // pred_fallthru
    _
  // Predicated region
  $region18: #{context_forward.1} parent=0 // pred_check
    _
  $region19: #{context_forward.1} parent=0 // pred_check_branch
    %19 = sbr.rel (0) target = $region21
  $region20: #{context_forward.1} parent=0 // pred_region
    _
  $region21: #{context_forward.1} parent=0 // pred_fallthru
    _
  %p20 = scmp.eq.s32.totalorder 0, 0
  // Predicated region
  $region22: #{context_forward.1} parent=0 // pred_check
    %p21 = pneg %p20
  $region23: #{context_forward.1} parent=0 // pred_check_branch
    %23 = sbr.rel (%p21) target = $region25
  $region24: #{context_forward.1} parent=0 // pred_region
    %24 = vst [vmem:[#allocation2] sm:$0xff] 0.0
  $region25: #{context_forward.1} parent=0 // pred_fallthru
    _
  %v25 = vld [vmem:[%s0] sm:$0xff]
  %v26 = vld [vmem:[%s0 + $0x8] sm:$0xff]
  %v27 = vld [vmem:[%s0 + $0x10] sm:$0xff]
  %v28 = vld [vmem:[%s0 + $0x18] sm:$0xff]
  %v29 = vld [vmem:[%s0 + $0x20] sm:$0xff]
  %v30 = vld [vmem:[%s0 + $0x28] sm:$0xff]
  %v31 = vld [vmem:[%s0 + $0x30] sm:$0xff]
  %v32 = vld [vmem:[%s0 + $0x38] sm:$0xff]
  %v33 = vld [vmem:[%s1] sm:$0xff]
  %v34 = vld [vmem:[%s1 + $0x8] sm:$0xff]
  %v35 = vld [vmem:[%s1 + $0x10] sm:$0xff]
  %v36 = vld [vmem:[%s1 + $0x18] sm:$0xf]
  %v37 = vld [vmem:[%s1 + $0x20] sm:$0xf]
  %v38 = vld [vmem:[%s1 + $0x28] sm:$0xf]
  %v39 = vld [vmem:[%s3] sm:$0x7]
  %v41 = vlaneseq
  %v42 = vshrl.u32 %v41, 7
  %v43 = vsub.s32 0, %v42
  %v44 = vrot.slane %v39, %v43
  %v45 = vlaneseq
  %v46 = vshrl.u32 %v45, 7
  %v47 = vsub.s32 1, %v46
  %v48 = vrot.slane %v39, %v47
  %v49 = vlaneseq
  %v50 = vshrl.u32 %v49, 7
  %v51 = vsub.s32 2, %v50
  %v52 = vrot.slane %v39, %v51
  %vm56 = vcmask 97280
  %v58 = vsel %vm56, %v25, 0
  %v61 = vsel %vm56, %v26, 0
  %v64 = vsel %vm56, %v27, 0
  %v67 = vsel %vm56, %v28, 0
  %v70 = vsel %vm56, %v29, 0
  %v73 = vsel %vm56, %v30, 0
  %v76 = vsel %vm56, %v31, 0
  %v79 = vsel %vm56, %v32, 0
  %vm81 = vcmask 1043456
  %v83 = vsel %vm81, %v36, 0
  %v86 = vsel %vm81, %v37, 0
  %v89 = vsel %vm81, %v38, 0
  %91 = vmatprep.subr.mxu0 0.0
  %92 = vmatpush1.msra.mxu0 0.0
  %93 = vmatprep.subr.mxu0 0.0
  %94 = vmatpush1.msra.mxu0 0.0
  %95 = vmatprep.subr.mxu0 0.0
  %96 = vmatpush1.msra.mxu0 0.0
  %97 = vmatprep.subr.mxu0 0.0
  %98 = vmatpush1.msra.mxu0 0.0
  %99 = vmatprep.subr.mxu0 0.0
  %100 = vmatpush1.msra.mxu0 0.0
  %101 = vmatprep.subr.mxu0 0.0
  %102 = vmatpush1.msra.mxu0 0.0
  %103 = vmatprep.subr.mxu0 0.0
  %104 = vmatpush1.msra.mxu0 0.0
  %105 = vmatprep.subr.mxu0 0.0
  %106 = vmatpush1.msra.mxu0 0.0
  %107 = vmatprep.subr.mxu0 0.0
  %108 = vmatpush1.msra.mxu0 0.0
  %109 = vmatprep.subr.mxu0 0.0
  %110 = vmatpush1.msra.mxu0 0.0
  %111 = vmatprep.subr.mxu0 0.0
  %112 = vmatpush1.msra.mxu0 0.0
  %113 = vmatprep.subr.mxu0 0.0
  %114 = vmatpush1.msra.mxu0 0.0
  %115 = vmatprep.subr.mxu0 0.0
  %116 = vmatpush1.msra.mxu0 0.0
  %117 = vmatprep.subr.mxu0 0.0
  %118 = vmatpush1.msra.mxu0 0.0
  %119 = vmatprep.subr.mxu0 %v86
  %120 = vmatpush1.msra.mxu0 %v83
  %121 = vmatprep.subr.mxu0 %v34
  %122 = vmatpush1.msra.mxu0 %v33
  %123 = vmatprep.subr.mxu0 0.0
  %124 = vmatpush2.msra.mxu0 0.0
  %125 = vmatprep.subr.mxu0 0.0
  %126 = vmatpush2.msra.mxu0 0.0
  %127 = vmatprep.subr.mxu0 0.0
  %128 = vmatpush2.msra.mxu0 0.0
  %129 = vmatprep.subr.mxu0 0.0
  %130 = vmatpush2.msra.mxu0 0.0
  %131 = vmatprep.subr.mxu0 0.0
  %132 = vmatpush2.msra.mxu0 0.0
  %133 = vmatprep.subr.mxu0 0.0
  %134 = vmatpush2.msra.mxu0 0.0
  %135 = vmatprep.subr.mxu0 0.0
  %136 = vmatpush2.msra.mxu0 0.0
  %137 = vmatprep.subr.mxu0 0.0
  %138 = vmatpush2.msra.mxu0 0.0
  %139 = vmatprep.subr.mxu0 0.0
  %140 = vmatpush2.msra.mxu0 0.0
  %141 = vmatprep.subr.mxu0 0.0
  %142 = vmatpush2.msra.mxu0 0.0
  %143 = vmatprep.subr.mxu0 0.0
  %144 = vmatpush2.msra.mxu0 0.0
  %145 = vmatprep.subr.mxu0 0.0
  %146 = vmatpush2.msra.mxu0 0.0
  %147 = vmatprep.subr.mxu0 0.0
  %148 = vmatpush2.msra.mxu0 0.0
  %149 = vmatprep.subr.mxu0 0.0
  %150 = vmatpush2.msra.mxu0 0.0
  %151 = vmatprep.subr.mxu0 0.0
  %152 = vmatpush2.msra.mxu0 0.0
  %153 = vmatprep.subr.mxu0 0.0
  %154 = vmatpush2.msra.mxu0 0.0
  %155 = vmatprep.mubr.f32.mxu0 0.0
  %156 = vmatmul.mubr.f32.gmra.mxu0 %v58
  %v157 = vpop.f32.mrf.mxu0
  %v158 = vadd.f32 %v44, %v157
  %v159 = vpop.f32.mrf.mxu0
  %v160 = vadd.f32 %v48, %v159
  %161 = vmatprep.mubr.f32.mxu0 0.0
  %162 = vmatmul.mubr.f32.gmra.mxu0 %v61
  %v163 = vpop.f32.mrf.mxu0
  %v164 = vadd.f32 %v44, %v163
  %v165 = vpop.f32.mrf.mxu0
  %v166 = vadd.f32 %v48, %v165
  %167 = vmatprep.mubr.f32.mxu0 0.0
  %168 = vmatmul.mubr.f32.gmra.mxu0 %v64
  %v169 = vpop.f32.mrf.mxu0
  %v170 = vadd.f32 %v44, %v169
  %v171 = vpop.f32.mrf.mxu0
  %v172 = vadd.f32 %v48, %v171
  %173 = vmatprep.mubr.f32.mxu0 0.0
  %174 = vmatmul.mubr.f32.gmra.mxu0 %v67
  %v175 = vpop.f32.mrf.mxu0
  %v176 = vadd.f32 %v44, %v175
  %v177 = vpop.f32.mrf.mxu0
  %v178 = vadd.f32 %v48, %v177
  %179 = vmatprep.mubr.f32.mxu0 0.0
  %180 = vmatmul.mubr.f32.gmra.mxu0 %v70
  %v181 = vpop.f32.mrf.mxu0
  %v182 = vadd.f32 %v44, %v181
  %v183 = vpop.f32.mrf.mxu0
  %v184 = vadd.f32 %v48, %v183
  %185 = vmatprep.mubr.f32.mxu0 0.0
  %186 = vmatmul.mubr.f32.gmra.mxu0 %v73
  %v187 = vpop.f32.mrf.mxu0
  %v188 = vadd.f32 %v44, %v187
  %v189 = vpop.f32.mrf.mxu0
  %v190 = vadd.f32 %v48, %v189
  %191 = vmatprep.mubr.f32.mxu0 0.0
  %192 = vmatmul.mubr.f32.gmra.mxu0 %v76
  %v193 = vpop.f32.mrf.mxu0
  %v194 = vadd.f32 %v44, %v193
  %v195 = vpop.f32.mrf.mxu0
  %v196 = vadd.f32 %v48, %v195
  %197 = vmatprep.mubr.f32.mxu0 0.0
  %198 = vmatmul.mubr.f32.gmra.mxu0 %v79
  %v199 = vpop.f32.mrf.mxu0
  %v200 = vadd.f32 %v44, %v199
  %v201 = vpop.f32.mrf.mxu0
  %v202 = vadd.f32 %v48, %v201
  %203 = vdwg.mxu0
  %204 = vmatprep.subr.mxu0 0.0
  %205 = vmatpush1.msra.mxu0 0.0
  %206 = vmatprep.subr.mxu0 0.0
  %207 = vmatpush1.msra.mxu0 0.0
  %208 = vmatprep.subr.mxu0 0.0
  %209 = vmatpush1.msra.mxu0 0.0
  %210 = vmatprep.subr.mxu0 0.0
  %211 = vmatpush1.msra.mxu0 0.0
  %212 = vmatprep.subr.mxu0 0.0
  %213 = vmatpush1.msra.mxu0 0.0
  %214 = vmatprep.subr.mxu0 0.0
  %215 = vmatpush1.msra.mxu0 0.0
  %216 = vmatprep.subr.mxu0 0.0
  %217 = vmatpush1.msra.mxu0 0.0
  %218 = vmatprep.subr.mxu0 0.0
  %219 = vmatpush1.msra.mxu0 0.0
  %220 = vmatprep.subr.mxu0 0.0
  %221 = vmatpush1.msra.mxu0 0.0
  %222 = vmatprep.subr.mxu0 0.0
  %223 = vmatpush1.msra.mxu0 0.0
  %224 = vmatprep.subr.mxu0 0.0
  %225 = vmatpush1.msra.mxu0 0.0
  %226 = vmatprep.subr.mxu0 0.0
  %227 = vmatpush1.msra.mxu0 0.0
  %228 = vmatprep.subr.mxu0 0.0
  %229 = vmatpush1.msra.mxu0 0.0
  %230 = vmatprep.subr.mxu0 0.0
  %231 = vmatpush1.msra.mxu0 0.0
  %232 = vmatprep.subr.mxu0 0.0
  %233 = vmatpush1.msra.mxu0 %v89
  %234 = vmatprep.subr.mxu0 0.0
  %235 = vmatpush1.msra.mxu0 %v35
  %236 = vmatprep.subr.mxu0 0.0
  %237 = vmatpush2.msra.mxu0 0.0
  %238 = vmatprep.subr.mxu0 0.0
  %239 = vmatpush2.msra.mxu0 0.0
  %240 = vmatprep.subr.mxu0 0.0
  %241 = vmatpush2.msra.mxu0 0.0
  %242 = vmatprep.subr.mxu0 0.0
  %243 = vmatpush2.msra.mxu0 0.0
  %244 = vmatprep.subr.mxu0 0.0
  %245 = vmatpush2.msra.mxu0 0.0
  %246 = vmatprep.subr.mxu0 0.0
  %247 = vmatpush2.msra.mxu0 0.0
  %248 = vmatprep.subr.mxu0 0.0
  %249 = vmatpush2.msra.mxu0 0.0
  %250 = vmatprep.subr.mxu0 0.0
  %251 = vmatpush2.msra.mxu0 0.0
  %252 = vmatprep.subr.mxu0 0.0
  %253 = vmatpush2.msra.mxu0 0.0
  %254 = vmatprep.subr.mxu0 0.0
  %255 = vmatpush2.msra.mxu0 0.0
  %256 = vmatprep.subr.mxu0 0.0
  %257 = vmatpush2.msra.mxu0 0.0
  %258 = vmatprep.subr.mxu0 0.0
  %259 = vmatpush2.msra.mxu0 0.0
  %260 = vmatprep.subr.mxu0 0.0
  %261 = vmatpush2.msra.mxu0 0.0
  %262 = vmatprep.subr.mxu0 0.0
  %263 = vmatpush2.msra.mxu0 0.0
  %264 = vmatprep.subr.mxu0 0.0
  %265 = vmatpush2.msra.mxu0 0.0
  %266 = vmatprep.subr.mxu0 0.0
  %267 = vmatpush2.msra.mxu0 0.0
  %268 = vmatprep.mubr.f32.mxu0 0.0
  %269 = vmatmul.mubr.f32.gmra.mxu0 %v58
  %v270 = vpop.f32.mrf.mxu0
  %v271 = vadd.f32 %v52, %v270
  %v272 = vpop.f32.mrf.mxu0
  %273 = vmatprep.mubr.f32.mxu0 0.0
  %274 = vmatmul.mubr.f32.gmra.mxu0 %v61
  %v275 = vpop.f32.mrf.mxu0
  %v276 = vadd.f32 %v52, %v275
  %v277 = vpop.f32.mrf.mxu0
  %278 = vmatprep.mubr.f32.mxu0 0.0
  %279 = vmatmul.mubr.f32.gmra.mxu0 %v64
  %v280 = vpop.f32.mrf.mxu0
  %v281 = vadd.f32 %v52, %v280
  %v282 = vpop.f32.mrf.mxu0
  %283 = vmatprep.mubr.f32.mxu0 0.0
  %284 = vmatmul.mubr.f32.gmra.mxu0 %v67
  %v285 = vpop.f32.mrf.mxu0
  %v286 = vadd.f32 %v52, %v285
  %v287 = vpop.f32.mrf.mxu0
  %288 = vmatprep.mubr.f32.mxu0 0.0
  %289 = vmatmul.mubr.f32.gmra.mxu0 %v70
  %v290 = vpop.f32.mrf.mxu0
  %v291 = vadd.f32 %v52, %v290
  %v292 = vpop.f32.mrf.mxu0
  %293 = vmatprep.mubr.f32.mxu0 0.0
  %294 = vmatmul.mubr.f32.gmra.mxu0 %v73
  %v295 = vpop.f32.mrf.mxu0
  %v296 = vadd.f32 %v52, %v295
  %v297 = vpop.f32.mrf.mxu0
  %298 = vmatprep.mubr.f32.mxu0 0.0
  %299 = vmatmul.mubr.f32.gmra.mxu0 %v76
  %v300 = vpop.f32.mrf.mxu0
  %v301 = vadd.f32 %v52, %v300
  %v302 = vpop.f32.mrf.mxu0
  %303 = vmatprep.mubr.f32.mxu0 0.0
  %304 = vmatmul.mubr.f32.gmra.mxu0 %v79
  %v305 = vpop.f32.mrf.mxu0
  %v306 = vadd.f32 %v52, %v305
  %v307 = vpop.f32.mrf.mxu0
  %308 = vdwg.mxu0
  %309 = vst [vmem:[#allocation3] sm:$0xff] %v158
  %310 = vst [vmem:[#allocation3 + $0x8] sm:$0xff] %v160
  %311 = vst [vmem:[#allocation3 + $0x10] sm:$0xff] %v271
  %312 = vst [vmem:[#allocation3 + $0x18] sm:$0xff] %v164
  %313 = vst [vmem:[#allocation3 + $0x20] sm:$0xff] %v166
  %314 = vst [vmem:[#allocation3 + $0x28] sm:$0xff] %v276
  %315 = vst [vmem:[#allocation3 + $0x30] sm:$0xff] %v170
  %316 = vst [vmem:[#allocation3 + $0x38] sm:$0xff] %v172
  %317 = vst [vmem:[#allocation3 + $0x40] sm:$0xff] %v281
  %318 = vst [vmem:[#allocation3 + $0x48] sm:$0xff] %v176
  %319 = vst [vmem:[#allocation3 + $0x50] sm:$0xff] %v178
  %320 = vst [vmem:[#allocation3 + $0x58] sm:$0xff] %v286
  %321 = vst [vmem:[#allocation3 + $0x60] sm:$0xff] %v182
  %322 = vst [vmem:[#allocation3 + $0x68] sm:$0xff] %v184
  %323 = vst [vmem:[#allocation3 + $0x70] sm:$0xff] %v291
  %324 = vst [vmem:[#allocation3 + $0x78] sm:$0xff] %v188
  %325 = vst [vmem:[#allocation3 + $0x80] sm:$0xff] %v190
  %326 = vst [vmem:[#allocation3 + $0x88] sm:$0xff] %v296
  %327 = vst [vmem:[#allocation3 + $0x90] sm:$0xff] %v194
  %328 = vst [vmem:[#allocation3 + $0x98] sm:$0xff] %v196
  %329 = vst [vmem:[#allocation3 + $0xa0] sm:$0xff] %v301
  %330 = vst [vmem:[#allocation3 + $0xa8] sm:$0xff] %v200
  %331 = vst [vmem:[#allocation3 + $0xb0] sm:$0xff] %v202
  %332 = vst [vmem:[#allocation3 + $0xb8] sm:$0xff] %v306
  %v333 = vld [vmem:[%s4] sm:$0x1]
  %v335 = vlaneseq
  %v336 = vshrl.u32 %v335, 7
  %v337 = vsub.s32 0, %v336
  %v338 = vrot.slane %v333, %v337
  %v340 = vld [vmem:[#allocation2] sm:$0xff]
  %s341 = smul.u32 0, 3
  %s342 = smul.addr %s341, 8
  %s343 = scalar_lea.vmem [#allocation3], %s342
  %v344 = vld [vmem:[%s343] sm:$0xff]
  %v345 = vld [vmem:[%s343 + $0x8] sm:$0xff]
  %v346 = vld [vmem:[%s343 + $0x10] sm:$0xff]
  %v347 = vld [vmem:[%s2] sm:$0xff]
  %v348 = vld [vmem:[%s2 + $0x8] sm:$0xff]
  %v349 = vld [vmem:[%s2 + $0x10] sm:$0xff]
  %v350 = vld [vmem:[%s2 + $0x18] sm:$0xff]
  %v351 = vld [vmem:[%s2 + $0x20] sm:$0xff]
  %v352 = vld [vmem:[%s2 + $0x28] sm:$0xff]
  %v353 = vld [vmem:[%s2 + $0x30] sm:$0xff]
  %v354 = vld [vmem:[%s2 + $0x38] sm:$0xff]
  %v355 = vld [vmem:[%s2 + $0x40] sm:$0xff]
  %v356 = vld [vmem:[%s2 + $0x48] sm:$0xff]
  %v357 = vld [vmem:[%s2 + $0x50] sm:$0xff]
  %v358 = vld [vmem:[%s2 + $0x58] sm:$0xff]
  %v359 = vld [vmem:[%s2 + $0x60] sm:$0xff]
  %v360 = vld [vmem:[%s2 + $0x68] sm:$0xff]
  %v361 = vld [vmem:[%s2 + $0x70] sm:$0xff]
  %v362 = vld [vmem:[%s2 + $0x78] sm:$0xff]
  %v363 = vld [vmem:[%s2 + $0x80] sm:$0xff]
  %v364 = vld [vmem:[%s2 + $0x88] sm:$0xff]
  %v365 = vld [vmem:[%s2 + $0x90] sm:$0xff]
  %v366 = vld [vmem:[%s2 + $0x98] sm:$0xff]
  %v367 = vld [vmem:[%s2 + $0xa0] sm:$0xff]
  %v368 = vld [vmem:[%s2 + $0xa8] sm:$0xff]
  %v369 = vld [vmem:[%s2 + $0xb0] sm:$0xff]
  %v370 = vld [vmem:[%s2 + $0xb8] sm:$0xff]
  %v371 = vld [vmem:[%s2 + $0xc0] sm:$0xff]
  %v372 = vld [vmem:[%s2 + $0xc8] sm:$0xff]
  %v373 = vld [vmem:[%s2 + $0xd0] sm:$0xff]
  %v374 = vld [vmem:[%s2 + $0xd8] sm:$0xff]
  %v375 = vld [vmem:[%s2 + $0xe0] sm:$0xff]
  %v376 = vld [vmem:[%s2 + $0xe8] sm:$0xff]
  %v377 = vld [vmem:[%s2 + $0xf0] sm:$0xff]
  %v378 = vld [vmem:[%s2 + $0xf8] sm:$0xff]
  %v379 = vld [vmem:[%s2 + $0x100] sm:$0xff]
  %v380 = vld [vmem:[%s2 + $0x108] sm:$0xff]
  %v381 = vld [vmem:[%s2 + $0x110] sm:$0xff]
  %v382 = vld [vmem:[%s2 + $0x118] sm:$0xff]
  %v383 = vld [vmem:[%s2 + $0x120] sm:$0xff]
  %v384 = vld [vmem:[%s2 + $0x128] sm:$0xff]
  %v385 = vld [vmem:[%s2 + $0x130] sm:$0xff]
  %v386 = vld [vmem:[%s2 + $0x138] sm:$0xff]
  %v387 = vld [vmem:[%s2 + $0x140] sm:$0xff]
  %v388 = vld [vmem:[%s2 + $0x148] sm:$0xff]
  %v389 = vld [vmem:[%s2 + $0x150] sm:$0xff]
  %v390 = vld [vmem:[%s2 + $0x158] sm:$0xff]
  %v391 = vld [vmem:[%s2 + $0x160] sm:$0xff]
  %v392 = vld [vmem:[%s2 + $0x168] sm:$0xff]
  %v393 = vld [vmem:[%s2 + $0x170] sm:$0xff]
  %v394 = vld [vmem:[%s2 + $0x178] sm:$0xff]
  %395 = vmatprep.subr.mxu0 %v393
  %396 = vmatpush1.msra.mxu0 %v392
  %397 = vmatprep.subr.mxu0 %v390
  %398 = vmatpush1.msra.mxu0 %v389
  %399 = vmatprep.subr.mxu0 %v387
  %400 = vmatpush1.msra.mxu0 %v386
  %401 = vmatprep.subr.mxu0 %v384
  %402 = vmatpush1.msra.mxu0 %v383
  %403 = vmatprep.subr.mxu0 %v381
  %404 = vmatpush1.msra.mxu0 %v380
  %405 = vmatprep.subr.mxu0 %v378
  %406 = vmatpush1.msra.mxu0 %v377
  %407 = vmatprep.subr.mxu0 %v375
  %408 = vmatpush1.msra.mxu0 %v374
  %409 = vmatprep.subr.mxu0 %v372
  %410 = vmatpush1.msra.mxu0 %v371
  %411 = vmatprep.subr.mxu0 %v369
  %412 = vmatpush1.msra.mxu0 %v368
  %413 = vmatprep.subr.mxu0 %v366
  %414 = vmatpush1.msra.mxu0 %v365
  %415 = vmatprep.subr.mxu0 %v363
  %416 = vmatpush1.msra.mxu0 %v362
  %417 = vmatprep.subr.mxu0 %v360
  %418 = vmatpush1.msra.mxu0 %v359
  %419 = vmatprep.subr.mxu0 %v357
  %420 = vmatpush1.msra.mxu0 %v356
  %421 = vmatprep.subr.mxu0 %v354
  %422 = vmatpush1.msra.mxu0 %v353
  %423 = vmatprep.subr.mxu0 %v351
  %424 = vmatpush1.msra.mxu0 %v350
  %425 = vmatprep.subr.mxu0 %v348
  %426 = vmatpush1.msra.mxu0 %v347
  %427 = vmatprep.subr.mxu0 0.0
  %428 = vmatpush2.msra.mxu0 0.0
  %429 = vmatprep.subr.mxu0 0.0
  %430 = vmatpush2.msra.mxu0 0.0
  %431 = vmatprep.subr.mxu0 0.0
  %432 = vmatpush2.msra.mxu0 0.0
  %433 = vmatprep.subr.mxu0 0.0
  %434 = vmatpush2.msra.mxu0 0.0
  %435 = vmatprep.subr.mxu0 0.0
  %436 = vmatpush2.msra.mxu0 0.0
  %437 = vmatprep.subr.mxu0 0.0
  %438 = vmatpush2.msra.mxu0 0.0
  %439 = vmatprep.subr.mxu0 0.0
  %440 = vmatpush2.msra.mxu0 0.0
  %441 = vmatprep.subr.mxu0 0.0
  %442 = vmatpush2.msra.mxu0 0.0
  %443 = vmatprep.subr.mxu0 0.0
  %444 = vmatpush2.msra.mxu0 0.0
  %445 = vmatprep.subr.mxu0 0.0
  %446 = vmatpush2.msra.mxu0 0.0
  %447 = vmatprep.subr.mxu0 0.0
  %448 = vmatpush2.msra.mxu0 0.0
  %449 = vmatprep.subr.mxu0 0.0
  %450 = vmatpush2.msra.mxu0 0.0
  %451 = vmatprep.subr.mxu0 0.0
  %452 = vmatpush2.msra.mxu0 0.0
  %453 = vmatprep.subr.mxu0 0.0
  %454 = vmatpush2.msra.mxu0 0.0
  %455 = vmatprep.subr.mxu0 0.0
  %456 = vmatpush2.msra.mxu0 0.0
  %457 = vmatprep.subr.mxu0 0.0
  %458 = vmatpush2.msra.mxu0 0.0
  %459 = vmatprep.mubr.f32.mxu0 0.0
  %460 = vmatmul.mubr.f32.gmra.mxu0 %v340
  %v461 = vpop.f32.mrf.mxu0
  %v462 = vadd.f32 0.0, %v461
  %v463 = vpop.f32.mrf.mxu0
  %v464 = vadd.f32 0.0, %v463
  %465 = vdwg.mxu0
  %466 = vmatprep.subr.mxu0 0.0
  %467 = vmatpush1.msra.mxu0 %v394
  %468 = vmatprep.subr.mxu0 0.0
  %469 = vmatpush1.msra.mxu0 %v391
  %470 = vmatprep.subr.mxu0 0.0
  %471 = vmatpush1.msra.mxu0 %v388
  %472 = vmatprep.subr.mxu0 0.0
  %473 = vmatpush1.msra.mxu0 %v385
  %474 = vmatprep.subr.mxu0 0.0
  %475 = vmatpush1.msra.mxu0 %v382
  %476 = vmatprep.subr.mxu0 0.0
  %477 = vmatpush1.msra.mxu0 %v379
  %478 = vmatprep.subr.mxu0 0.0
  %479 = vmatpush1.msra.mxu0 %v376
  %480 = vmatprep.subr.mxu0 0.0
  %481 = vmatpush1.msra.mxu0 %v373
  %482 = vmatprep.subr.mxu0 0.0
  %483 = vmatpush1.msra.mxu0 %v370
  %484 = vmatprep.subr.mxu0 0.0
  %485 = vmatpush1.msra.mxu0 %v367
  %486 = vmatprep.subr.mxu0 0.0
  %487 = vmatpush1.msra.mxu0 %v364
  %488 = vmatprep.subr.mxu0 0.0
  %489 = vmatpush1.msra.mxu0 %v361
  %490 = vmatprep.subr.mxu0 0.0
  %491 = vmatpush1.msra.mxu0 %v358
  %492 = vmatprep.subr.mxu0 0.0
  %493 = vmatpush1.msra.mxu0 %v355
  %494 = vmatprep.subr.mxu0 0.0
  %495 = vmatpush1.msra.mxu0 %v352
  %496 = vmatprep.subr.mxu0 0.0
  %497 = vmatpush1.msra.mxu0 %v349
  %498 = vmatprep.subr.mxu0 0.0
  %499 = vmatpush2.msra.mxu0 0.0
  %500 = vmatprep.subr.mxu0 0.0
  %501 = vmatpush2.msra.mxu0 0.0
  %502 = vmatprep.subr.mxu0 0.0
  %503 = vmatpush2.msra.mxu0 0.0
  %504 = vmatprep.subr.mxu0 0.0
  %505 = vmatpush2.msra.mxu0 0.0
  %506 = vmatprep.subr.mxu0 0.0
  %507 = vmatpush2.msra.mxu0 0.0
  %508 = vmatprep.subr.mxu0 0.0
  %509 = vmatpush2.msra.mxu0 0.0
  %510 = vmatprep.subr.mxu0 0.0
  %511 = vmatpush2.msra.mxu0 0.0
  %512 = vmatprep.subr.mxu0 0.0
  %513 = vmatpush2.msra.mxu0 0.0
  %514 = vmatprep.subr.mxu0 0.0
  %515 = vmatpush2.msra.mxu0 0.0
  %516 = vmatprep.subr.mxu0 0.0
  %517 = vmatpush2.msra.mxu0 0.0
  %518 = vmatprep.subr.mxu0 0.0
  %519 = vmatpush2.msra.mxu0 0.0
  %520 = vmatprep.subr.mxu0 0.0
  %521 = vmatpush2.msra.mxu0 0.0
  %522 = vmatprep.subr.mxu0 0.0
  %523 = vmatpush2.msra.mxu0 0.0
  %524 = vmatprep.subr.mxu0 0.0
  %525 = vmatpush2.msra.mxu0 0.0
  %526 = vmatprep.subr.mxu0 0.0
  %527 = vmatpush2.msra.mxu0 0.0
  %528 = vmatprep.subr.mxu0 0.0
  %529 = vmatpush2.msra.mxu0 0.0
  %530 = vmatprep.mubr.f32.mxu0 0.0
  %531 = vmatmul.mubr.f32.gmra.mxu0 %v340
  %v532 = vpop.f32.mrf.mxu0
  %v533 = vadd.f32 0.0, %v532
  %v534 = vpop.f32.mrf.mxu0
  %535 = vdwg.mxu0
  %v536 = vadd.f32 %v344, %v462
  %v537 = vxor.u32 %v536, 2147483648
  %v538 = vmul.f32 %v537, 1.442695
  %v539 = vpow.pop %v538
  %v540 = vadd.f32 %v539, 1.0
  %v541 = vrcp.pop %v540
  %v542 = vmul.f32 1.0, %v541
  %v543 = vadd.f32 %v345, %v464
  %v544 = vxor.u32 %v543, 2147483648
  %v545 = vmul.f32 %v544, 1.442695
  %v546 = vpow.pop %v545
  %v547 = vadd.f32 %v546, 1.0
  %v548 = vrcp.pop %v547
  %v549 = vmul.f32 1.0, %v548
  %v550 = vadd.f32 %v533, %v338
  %v551 = vmul.f32 %v542, %v550
  %v552 = vadd.f32 %v346, %v551
  %v553 = vtanh.pop %v552
  %v554 = vsub.f32 1.0, %v549
  %v555 = vmul.f32 %v554, %v553
  %v556 = vmul.f32 %v549, %v340
  %v557 = vadd.f32 %v555, %v556
  %s558 = smul.u32 1, 3
  %s559 = smul.addr %s558, 8
  %s560 = scalar_lea.vmem [#allocation3], %s559
  %v561 = vld [vmem:[%s560] sm:$0xff]
  %v562 = vld [vmem:[%s560 + $0x8] sm:$0xff]
  %v563 = vld [vmem:[%s560 + $0x10] sm:$0xff]
  %564 = vmatprep.subr.mxu0 %v393
  %565 = vmatpush1.msra.mxu0 %v392
  %566 = vmatprep.subr.mxu0 %v390
  %567 = vmatpush1.msra.mxu0 %v389
  %568 = vmatprep.subr.mxu0 %v387
  %569 = vmatpush1.msra.mxu0 %v386
  %570 = vmatprep.subr.mxu0 %v384
  %571 = vmatpush1.msra.mxu0 %v383
  %572 = vmatprep.subr.mxu0 %v381
  %573 = vmatpush1.msra.mxu0 %v380
  %574 = vmatprep.subr.mxu0 %v378
  %575 = vmatpush1.msra.mxu0 %v377
  %576 = vmatprep.subr.mxu0 %v375
  %577 = vmatpush1.msra.mxu0 %v374
  %578 = vmatprep.subr.mxu0 %v372
  %579 = vmatpush1.msra.mxu0 %v371
  %580 = vmatprep.subr.mxu0 %v369
  %581 = vmatpush1.msra.mxu0 %v368
  %582 = vmatprep.subr.mxu0 %v366
  %583 = vmatpush1.msra.mxu0 %v365
  %584 = vmatprep.subr.mxu0 %v363
  %585 = vmatpush1.msra.mxu0 %v362
  %586 = vmatprep.subr.mxu0 %v360
  %587 = vmatpush1.msra.mxu0 %v359
  %588 = vmatprep.subr.mxu0 %v357
  %589 = vmatpush1.msra.mxu0 %v356
  %590 = vmatprep.subr.mxu0 %v354
  %591 = vmatpush1.msra.mxu0 %v353
  %592 = vmatprep.subr.mxu0 %v351
  %593 = vmatpush1.msra.mxu0 %v350
  %594 = vmatprep.subr.mxu0 %v348
  %595 = vmatpush1.msra.mxu0 %v347
  %596 = vmatprep.subr.mxu0 0.0
  %597 = vmatpush2.msra.mxu0 0.0
  %598 = vmatprep.subr.mxu0 0.0
  %599 = vmatpush2.msra.mxu0 0.0
  %600 = vmatprep.subr.mxu0 0.0
  %601 = vmatpush2.msra.mxu0 0.0
  %602 = vmatprep.subr.mxu0 0.0
  %603 = vmatpush2.msra.mxu0 0.0
  %604 = vmatprep.subr.mxu0 0.0
  %605 = vmatpush2.msra.mxu0 0.0
  %606 = vmatprep.subr.mxu0 0.0
  %607 = vmatpush2.msra.mxu0 0.0
  %608 = vmatprep.subr.mxu0 0.0
  %609 = vmatpush2.msra.mxu0 0.0
  %610 = vmatprep.subr.mxu0 0.0
  %611 = vmatpush2.msra.mxu0 0.0
  %612 = vmatprep.subr.mxu0 0.0
  %613 = vmatpush2.msra.mxu0 0.0
  %614 = vmatprep.subr.mxu0 0.0
  %615 = vmatpush2.msra.mxu0 0.0
  %616 = vmatprep.subr.mxu0 0.0
  %617 = vmatpush2.msra.mxu0 0.0
  %618 = vmatprep.subr.mxu0 0.0
  %619 = vmatpush2.msra.mxu0 0.0
  %620 = vmatprep.subr.mxu0 0.0
  %621 = vmatpush2.msra.mxu0 0.0
  %622 = vmatprep.subr.mxu0 0.0
  %623 = vmatpush2.msra.mxu0 0.0
  %624 = vmatprep.subr.mxu0 0.0
  %625 = vmatpush2.msra.mxu0 0.0
  %626 = vmatprep.subr.mxu0 0.0
  %627 = vmatpush2.msra.mxu0 0.0
  %628 = vmatprep.mubr.f32.mxu0 0.0
  %629 = vmatmul.mubr.f32.gmra.mxu0 %v557
  %v630 = vpop.f32.mrf.mxu0
  %v631 = vadd.f32 0.0, %v630
  %v632 = vpop.f32.mrf.mxu0
  %v633 = vadd.f32 0.0, %v632
  %634 = vdwg.mxu0
  %635 = vmatprep.subr.mxu0 0.0
  %636 = vmatpush1.msra.mxu0 %v394
  %637 = vmatprep.subr.mxu0 0.0
  %638 = vmatpush1.msra.mxu0 %v391
  %639 = vmatprep.subr.mxu0 0.0
  %640 = vmatpush1.msra.mxu0 %v388
  %641 = vmatprep.subr.mxu0 0.0
  %642 = vmatpush1.msra.mxu0 %v385
  %643 = vmatprep.subr.mxu0 0.0
  %644 = vmatpush1.msra.mxu0 %v382
  %645 = vmatprep.subr.mxu0 0.0
  %646 = vmatpush1.msra.mxu0 %v379
  %647 = vmatprep.subr.mxu0 0.0
  %648 = vmatpush1.msra.mxu0 %v376
  %649 = vmatprep.subr.mxu0 0.0
  %650 = vmatpush1.msra.mxu0 %v373
  %651 = vmatprep.subr.mxu0 0.0
  %652 = vmatpush1.msra.mxu0 %v370
  %653 = vmatprep.subr.mxu0 0.0
  %654 = vmatpush1.msra.mxu0 %v367
  %655 = vmatprep.subr.mxu0 0.0
  %656 = vmatpush1.msra.mxu0 %v364
  %657 = vmatprep.subr.mxu0 0.0
  %658 = vmatpush1.msra.mxu0 %v361
  %659 = vmatprep.subr.mxu0 0.0
  %660 = vmatpush1.msra.mxu0 %v358
  %661 = vmatprep.subr.mxu0 0.0
  %662 = vmatpush1.msra.mxu0 %v355
  %663 = vmatprep.subr.mxu0 0.0
  %664 = vmatpush1.msra.mxu0 %v352
  %665 = vmatprep.subr.mxu0 0.0
  %666 = vmatpush1.msra.mxu0 %v349
  %667 = vmatprep.subr.mxu0 0.0
  %668 = vmatpush2.msra.mxu0 0.0
  %669 = vmatprep.subr.mxu0 0.0
  %670 = vmatpush2.msra.mxu0 0.0
  %671 = vmatprep.subr.mxu0 0.0
  %672 = vmatpush2.msra.mxu0 0.0
  %673 = vmatprep.subr.mxu0 0.0
  %674 = vmatpush2.msra.mxu0 0.0
  %675 = vmatprep.subr.mxu0 0.0
  %676 = vmatpush2.msra.mxu0 0.0
  %677 = vmatprep.subr.mxu0 0.0
  %678 = vmatpush2.msra.mxu0 0.0
  %679 = vmatprep.subr.mxu0 0.0
  %680 = vmatpush2.msra.mxu0 0.0
  %681 = vmatprep.subr.mxu0 0.0
  %682 = vmatpush2.msra.mxu0 0.0
  %683 = vmatprep.subr.mxu0 0.0
  %684 = vmatpush2.msra.mxu0 0.0
  %685 = vmatprep.subr.mxu0 0.0
  %686 = vmatpush2.msra.mxu0 0.0
  %687 = vmatprep.subr.mxu0 0.0
  %688 = vmatpush2.msra.mxu0 0.0
  %689 = vmatprep.subr.mxu0 0.0
  %690 = vmatpush2.msra.mxu0 0.0
  %691 = vmatprep.subr.mxu0 0.0
  %692 = vmatpush2.msra.mxu0 0.0
  %693 = vmatprep.subr.mxu0 0.0
  %694 = vmatpush2.msra.mxu0 0.0
  %695 = vmatprep.subr.mxu0 0.0
  %696 = vmatpush2.msra.mxu0 0.0
  %697 = vmatprep.subr.mxu0 0.0
  %698 = vmatpush2.msra.mxu0 0.0
  %699 = vmatprep.mubr.f32.mxu0 0.0
  %700 = vmatmul.mubr.f32.gmra.mxu0 %v557
  %v701 = vpop.f32.mrf.mxu0
  %v702 = vadd.f32 0.0, %v701
  %v703 = vpop.f32.mrf.mxu0
  %704 = vdwg.mxu0
  %v705 = vadd.f32 %v561, %v631
  %v706 = vxor.u32 %v705, 2147483648
  %v707 = vmul.f32 %v706, 1.442695
  %v708 = vpow.pop %v707
  %v709 = vadd.f32 %v708, 1.0
  %v710 = vrcp.pop %v709
  %v711 = vmul.f32 1.0, %v710
  %v712 = vadd.f32 %v562, %v633
  %v713 = vxor.u32 %v712, 2147483648
  %v714 = vmul.f32 %v713, 1.442695
  %v715 = vpow.pop %v714
  %v716 = vadd.f32 %v715, 1.0
  %v717 = vrcp.pop %v716
  %v718 = vmul.f32 1.0, %v717
  %v719 = vadd.f32 %v702, %v338
  %v720 = vmul.f32 %v711, %v719
  %v721 = vadd.f32 %v563, %v720
  %v722 = vtanh.pop %v721
  %v723 = vsub.f32 1.0, %v718
  %v724 = vmul.f32 %v723, %v722
  %v725 = vmul.f32 %v718, %v557
  %v726 = vadd.f32 %v724, %v725
  %s727 = smul.u32 2, 3
  %s728 = smul.addr %s727, 8
  %s729 = scalar_lea.vmem [#allocation3], %s728
  %v730 = vld [vmem:[%s729] sm:$0xff]
  %v731 = vld [vmem:[%s729 + $0x8] sm:$0xff]
  %v732 = vld [vmem:[%s729 + $0x10] sm:$0xff]
  %733 = vmatprep.subr.mxu0 %v393
  %734 = vmatpush1.msra.mxu0 %v392
  %735 = vmatprep.subr.mxu0 %v390
  %736 = vmatpush1.msra.mxu0 %v389
  %737 = vmatprep.subr.mxu0 %v387
  %738 = vmatpush1.msra.mxu0 %v386
  %739 = vmatprep.subr.mxu0 %v384
  %740 = vmatpush1.msra.mxu0 %v383
  %741 = vmatprep.subr.mxu0 %v381
  %742 = vmatpush1.msra.mxu0 %v380
  %743 = vmatprep.subr.mxu0 %v378
  %744 = vmatpush1.msra.mxu0 %v377
  %745 = vmatprep.subr.mxu0 %v375
  %746 = vmatpush1.msra.mxu0 %v374
  %747 = vmatprep.subr.mxu0 %v372
  %748 = vmatpush1.msra.mxu0 %v371
  %749 = vmatprep.subr.mxu0 %v369
  %750 = vmatpush1.msra.mxu0 %v368
  %751 = vmatprep.subr.mxu0 %v366
  %752 = vmatpush1.msra.mxu0 %v365
  %753 = vmatprep.subr.mxu0 %v363
  %754 = vmatpush1.msra.mxu0 %v362
  %755 = vmatprep.subr.mxu0 %v360
  %756 = vmatpush1.msra.mxu0 %v359
  %757 = vmatprep.subr.mxu0 %v357
  %758 = vmatpush1.msra.mxu0 %v356
  %759 = vmatprep.subr.mxu0 %v354
  %760 = vmatpush1.msra.mxu0 %v353
  %761 = vmatprep.subr.mxu0 %v351
  %762 = vmatpush1.msra.mxu0 %v350
  %763 = vmatprep.subr.mxu0 %v348
  %764 = vmatpush1.msra.mxu0 %v347
  %765 = vmatprep.subr.mxu0 0.0
  %766 = vmatpush2.msra.mxu0 0.0
  %767 = vmatprep.subr.mxu0 0.0
  %768 = vmatpush2.msra.mxu0 0.0
  %769 = vmatprep.subr.mxu0 0.0
  %770 = vmatpush2.msra.mxu0 0.0
  %771 = vmatprep.subr.mxu0 0.0
  %772 = vmatpush2.msra.mxu0 0.0
  %773 = vmatprep.subr.mxu0 0.0
  %774 = vmatpush2.msra.mxu0 0.0
  %775 = vmatprep.subr.mxu0 0.0
  %776 = vmatpush2.msra.mxu0 0.0
  %777 = vmatprep.subr.mxu0 0.0
  %778 = vmatpush2.msra.mxu0 0.0
  %779 = vmatprep.subr.mxu0 0.0
  %780 = vmatpush2.msra.mxu0 0.0
  %781 = vmatprep.subr.mxu0 0.0
  %782 = vmatpush2.msra.mxu0 0.0
  %783 = vmatprep.subr.mxu0 0.0
  %784 = vmatpush2.msra.mxu0 0.0
  %785 = vmatprep.subr.mxu0 0.0
  %786 = vmatpush2.msra.mxu0 0.0
  %787 = vmatprep.subr.mxu0 0.0
  %788 = vmatpush2.msra.mxu0 0.0
  %789 = vmatprep.subr.mxu0 0.0
  %790 = vmatpush2.msra.mxu0 0.0
  %791 = vmatprep.subr.mxu0 0.0
  %792 = vmatpush2.msra.mxu0 0.0
  %793 = vmatprep.subr.mxu0 0.0
  %794 = vmatpush2.msra.mxu0 0.0
  %795 = vmatprep.subr.mxu0 0.0
  %796 = vmatpush2.msra.mxu0 0.0
  %797 = vmatprep.mubr.f32.mxu0 0.0
  %798 = vmatmul.mubr.f32.gmra.mxu0 %v726
  %v799 = vpop.f32.mrf.mxu0
  %v800 = vadd.f32 0.0, %v799
  %v801 = vpop.f32.mrf.mxu0
  %v802 = vadd.f32 0.0, %v801
  %803 = vdwg.mxu0
  %804 = vmatprep.subr.mxu0 0.0
  %805 = vmatpush1.msra.mxu0 %v394
  %806 = vmatprep.subr.mxu0 0.0
  %807 = vmatpush1.msra.mxu0 %v391
  %808 = vmatprep.subr.mxu0 0.0
  %809 = vmatpush1.msra.mxu0 %v388
  %810 = vmatprep.subr.mxu0 0.0
  %811 = vmatpush1.msra.mxu0 %v385
  %812 = vmatprep.subr.mxu0 0.0
  %813 = vmatpush1.msra.mxu0 %v382
  %814 = vmatprep.subr.mxu0 0.0
  %815 = vmatpush1.msra.mxu0 %v379
  %816 = vmatprep.subr.mxu0 0.0
  %817 = vmatpush1.msra.mxu0 %v376
  %818 = vmatprep.subr.mxu0 0.0
  %819 = vmatpush1.msra.mxu0 %v373
  %820 = vmatprep.subr.mxu0 0.0
  %821 = vmatpush1.msra.mxu0 %v370
  %822 = vmatprep.subr.mxu0 0.0
  %823 = vmatpush1.msra.mxu0 %v367
  %824 = vmatprep.subr.mxu0 0.0
  %825 = vmatpush1.msra.mxu0 %v364
  %826 = vmatprep.subr.mxu0 0.0
  %827 = vmatpush1.msra.mxu0 %v361
  %828 = vmatprep.subr.mxu0 0.0
  %829 = vmatpush1.msra.mxu0 %v358
  %830 = vmatprep.subr.mxu0 0.0
  %831 = vmatpush1.msra.mxu0 %v355
  %832 = vmatprep.subr.mxu0 0.0
  %833 = vmatpush1.msra.mxu0 %v352
  %834 = vmatprep.subr.mxu0 0.0
  %835 = vmatpush1.msra.mxu0 %v349
  %836 = vmatprep.subr.mxu0 0.0
  %837 = vmatpush2.msra.mxu0 0.0
  %838 = vmatprep.subr.mxu0 0.0
  %839 = vmatpush2.msra.mxu0 0.0
  %840 = vmatprep.subr.mxu0 0.0
  %841 = vmatpush2.msra.mxu0 0.0
  %842 = vmatprep.subr.mxu0 0.0
  %843 = vmatpush2.msra.mxu0 0.0
  %844 = vmatprep.subr.mxu0 0.0
  %845 = vmatpush2.msra.mxu0 0.0
  %846 = vmatprep.subr.mxu0 0.0
  %847 = vmatpush2.msra.mxu0 0.0
  %848 = vmatprep.subr.mxu0 0.0
  %849 = vmatpush2.msra.mxu0 0.0
  %850 = vmatprep.subr.mxu0 0.0
  %851 = vmatpush2.msra.mxu0 0.0
  %852 = vmatprep.subr.mxu0 0.0
  %853 = vmatpush2.msra.mxu0 0.0
  %854 = vmatprep.subr.mxu0 0.0
  %855 = vmatpush2.msra.mxu0 0.0
  %856 = vmatprep.subr.mxu0 0.0
  %857 = vmatpush2.msra.mxu0 0.0
  %858 = vmatprep.subr.mxu0 0.0
  %859 = vmatpush2.msra.mxu0 0.0
  %860 = vmatprep.subr.mxu0 0.0
  %861 = vmatpush2.msra.mxu0 0.0
  %862 = vmatprep.subr.mxu0 0.0
  %863 = vmatpush2.msra.mxu0 0.0
  %864 = vmatprep.subr.mxu0 0.0
  %865 = vmatpush2.msra.mxu0 0.0
  %866 = vmatprep.subr.mxu0 0.0
  %867 = vmatpush2.msra.mxu0 0.0
  %868 = vmatprep.mubr.f32.mxu0 0.0
  %869 = vmatmul.mubr.f32.gmra.mxu0 %v726
  %v870 = vpop.f32.mrf.mxu0
  %v871 = vadd.f32 0.0, %v870
  %v872 = vpop.f32.mrf.mxu0
  %873 = vdwg.mxu0
  %v874 = vadd.f32 %v730, %v800
  %v875 = vxor.u32 %v874, 2147483648
  %v876 = vmul.f32 %v875, 1.442695
  %v877 = vpow.pop %v876
  %v878 = vadd.f32 %v877, 1.0
  %v879 = vrcp.pop %v878
  %v880 = vmul.f32 1.0, %v879
  %v881 = vadd.f32 %v731, %v802
  %v882 = vxor.u32 %v881, 2147483648
  %v883 = vmul.f32 %v882, 1.442695
  %v884 = vpow.pop %v883
  %v885 = vadd.f32 %v884, 1.0
  %v886 = vrcp.pop %v885
  %v887 = vmul.f32 1.0, %v886
  %v888 = vadd.f32 %v871, %v338
  %v889 = vmul.f32 %v880, %v888
  %v890 = vadd.f32 %v732, %v889
  %v891 = vtanh.pop %v890
  %v892 = vsub.f32 1.0, %v887
  %v893 = vmul.f32 %v892, %v891
  %v894 = vmul.f32 %v887, %v726
  %v895 = vadd.f32 %v893, %v894
  %s896 = smul.u32 3, 3
  %s897 = smul.addr %s896, 8
  %s898 = scalar_lea.vmem [#allocation3], %s897
  %v899 = vld [vmem:[%s898] sm:$0xff]
  %v900 = vld [vmem:[%s898 + $0x8] sm:$0xff]
  %v901 = vld [vmem:[%s898 + $0x10] sm:$0xff]
  %902 = vmatprep.subr.mxu0 %v393
  %903 = vmatpush1.msra.mxu0 %v392
  %904 = vmatprep.subr.mxu0 %v390
  %905 = vmatpush1.msra.mxu0 %v389
  %906 = vmatprep.subr.mxu0 %v387
  %907 = vmatpush1.msra.mxu0 %v386
  %908 = vmatprep.subr.mxu0 %v384
  %909 = vmatpush1.msra.mxu0 %v383
  %910 = vmatprep.subr.mxu0 %v381
  %911 = vmatpush1.msra.mxu0 %v380
  %912 = vmatprep.subr.mxu0 %v378
  %913 = vmatpush1.msra.mxu0 %v377
  %914 = vmatprep.subr.mxu0 %v375
  %915 = vmatpush1.msra.mxu0 %v374
  %916 = vmatprep.subr.mxu0 %v372
  %917 = vmatpush1.msra.mxu0 %v371
  %918 = vmatprep.subr.mxu0 %v369
  %919 = vmatpush1.msra.mxu0 %v368
  %920 = vmatprep.subr.mxu0 %v366
  %921 = vmatpush1.msra.mxu0 %v365
  %922 = vmatprep.subr.mxu0 %v363
  %923 = vmatpush1.msra.mxu0 %v362
  %924 = vmatprep.subr.mxu0 %v360
  %925 = vmatpush1.msra.mxu0 %v359
  %926 = vmatprep.subr.mxu0 %v357
  %927 = vmatpush1.msra.mxu0 %v356
  %928 = vmatprep.subr.mxu0 %v354
  %929 = vmatpush1.msra.mxu0 %v353
  %930 = vmatprep.subr.mxu0 %v351
  %931 = vmatpush1.msra.mxu0 %v350
  %932 = vmatprep.subr.mxu0 %v348
  %933 = vmatpush1.msra.mxu0 %v347
  %934 = vmatprep.subr.mxu0 0.0
  %935 = vmatpush2.msra.mxu0 0.0
  %936 = vmatprep.subr.mxu0 0.0
  %937 = vmatpush2.msra.mxu0 0.0
  %938 = vmatprep.subr.mxu0 0.0
  %939 = vmatpush2.msra.mxu0 0.0
  %940 = vmatprep.subr.mxu0 0.0
  %941 = vmatpush2.msra.mxu0 0.0
  %942 = vmatprep.subr.mxu0 0.0
  %943 = vmatpush2.msra.mxu0 0.0
  %944 = vmatprep.subr.mxu0 0.0
  %945 = vmatpush2.msra.mxu0 0.0
  %946 = vmatprep.subr.mxu0 0.0
  %947 = vmatpush2.msra.mxu0 0.0
  %948 = vmatprep.subr.mxu0 0.0
  %949 = vmatpush2.msra.mxu0 0.0
  %950 = vmatprep.subr.mxu0 0.0
  %951 = vmatpush2.msra.mxu0 0.0
  %952 = vmatprep.subr.mxu0 0.0
  %953 = vmatpush2.msra.mxu0 0.0
  %954 = vmatprep.subr.mxu0 0.0
  %955 = vmatpush2.msra.mxu0 0.0
  %956 = vmatprep.subr.mxu0 0.0
  %957 = vmatpush2.msra.mxu0 0.0
  %958 = vmatprep.subr.mxu0 0.0
  %959 = vmatpush2.msra.mxu0 0.0
  %960 = vmatprep.subr.mxu0 0.0
  %961 = vmatpush2.msra.mxu0 0.0
  %962 = vmatprep.subr.mxu0 0.0
  %963 = vmatpush2.msra.mxu0 0.0
  %964 = vmatprep.subr.mxu0 0.0
  %965 = vmatpush2.msra.mxu0 0.0
  %966 = vmatprep.mubr.f32.mxu0 0.0
  %967 = vmatmul.mubr.f32.gmra.mxu0 %v895
  %v968 = vpop.f32.mrf.mxu0
  %v969 = vadd.f32 0.0, %v968
  %v970 = vpop.f32.mrf.mxu0
  %v971 = vadd.f32 0.0, %v970
  %972 = vdwg.mxu0
  %973 = vmatprep.subr.mxu0 0.0
  %974 = vmatpush1.msra.mxu0 %v394
  %975 = vmatprep.subr.mxu0 0.0
  %976 = vmatpush1.msra.mxu0 %v391
  %977 = vmatprep.subr.mxu0 0.0
  %978 = vmatpush1.msra.mxu0 %v388
  %979 = vmatprep.subr.mxu0 0.0
  %980 = vmatpush1.msra.mxu0 %v385
  %981 = vmatprep.subr.mxu0 0.0
  %982 = vmatpush1.msra.mxu0 %v382
  %983 = vmatprep.subr.mxu0 0.0
  %984 = vmatpush1.msra.mxu0 %v379
  %985 = vmatprep.subr.mxu0 0.0
  %986 = vmatpush1.msra.mxu0 %v376
  %987 = vmatprep.subr.mxu0 0.0
  %988 = vmatpush1.msra.mxu0 %v373
  %989 = vmatprep.subr.mxu0 0.0
  %990 = vmatpush1.msra.mxu0 %v370
  %991 = vmatprep.subr.mxu0 0.0
  %992 = vmatpush1.msra.mxu0 %v367
  %993 = vmatprep.subr.mxu0 0.0
  %994 = vmatpush1.msra.mxu0 %v364
  %995 = vmatprep.subr.mxu0 0.0
  %996 = vmatpush1.msra.mxu0 %v361
  %997 = vmatprep.subr.mxu0 0.0
  %998 = vmatpush1.msra.mxu0 %v358
  %999 = vmatprep.subr.mxu0 0.0
  %1000 = vmatpush1.msra.mxu0 %v355
  %1001 = vmatprep.subr.mxu0 0.0
  %1002 = vmatpush1.msra.mxu0 %v352
  %1003 = vmatprep.subr.mxu0 0.0
  %1004 = vmatpush1.msra.mxu0 %v349
  %1005 = vmatprep.subr.mxu0 0.0
  %1006 = vmatpush2.msra.mxu0 0.0
  %1007 = vmatprep.subr.mxu0 0.0
  %1008 = vmatpush2.msra.mxu0 0.0
  %1009 = vmatprep.subr.mxu0 0.0
  %1010 = vmatpush2.msra.mxu0 0.0
  %1011 = vmatprep.subr.mxu0 0.0
  %1012 = vmatpush2.msra.mxu0 0.0
  %1013 = vmatprep.subr.mxu0 0.0
  %1014 = vmatpush2.msra.mxu0 0.0
  %1015 = vmatprep.subr.mxu0 0.0
  %1016 = vmatpush2.msra.mxu0 0.0
  %1017 = vmatprep.subr.mxu0 0.0
  %1018 = vmatpush2.msra.mxu0 0.0
  %1019 = vmatprep.subr.mxu0 0.0
  %1020 = vmatpush2.msra.mxu0 0.0
  %1021 = vmatprep.subr.mxu0 0.0
  %1022 = vmatpush2.msra.mxu0 0.0
  %1023 = vmatprep.subr.mxu0 0.0
  %1024 = vmatpush2.msra.mxu0 0.0
  %1025 = vmatprep.subr.mxu0 0.0
  %1026 = vmatpush2.msra.mxu0 0.0
  %1027 = vmatprep.subr.mxu0 0.0
  %1028 = vmatpush2.msra.mxu0 0.0
  %1029 = vmatprep.subr.mxu0 0.0
  %1030 = vmatpush2.msra.mxu0 0.0
  %1031 = vmatprep.subr.mxu0 0.0
  %1032 = vmatpush2.msra.mxu0 0.0
  %1033 = vmatprep.subr.mxu0 0.0
  %1034 = vmatpush2.msra.mxu0 0.0
  %1035 = vmatprep.subr.mxu0 0.0
  %1036 = vmatpush2.msra.mxu0 0.0
  %1037 = vmatprep.mubr.f32.mxu0 0.0
  %1038 = vmatmul.mubr.f32.gmra.mxu0 %v895
  %v1039 = vpop.f32.mrf.mxu0
  %v1040 = vadd.f32 0.0, %v1039
  %v1041 = vpop.f32.mrf.mxu0
  %1042 = vdwg.mxu0
  %v1043 = vadd.f32 %v899, %v969
  %v1044 = vxor.u32 %v1043, 2147483648
  %v1045 = vmul.f32 %v1044, 1.442695
  %v1046 = vpow.pop %v1045
  %v1047 = vadd.f32 %v1046, 1.0
  %v1048 = vrcp.pop %v1047
  %v1049 = vmul.f32 1.0, %v1048
  %v1050 = vadd.f32 %v900, %v971
  %v1051 = vxor.u32 %v1050, 2147483648
  %v1052 = vmul.f32 %v1051, 1.442695
  %v1053 = vpow.pop %v1052
  %v1054 = vadd.f32 %v1053, 1.0
  %v1055 = vrcp.pop %v1054
  %v1056 = vmul.f32 1.0, %v1055
  %v1057 = vadd.f32 %v1040, %v338
  %v1058 = vmul.f32 %v1049, %v1057
  %v1059 = vadd.f32 %v901, %v1058
  %v1060 = vtanh.pop %v1059
  %v1061 = vsub.f32 1.0, %v1056
  %v1062 = vmul.f32 %v1061, %v1060
  %v1063 = vmul.f32 %v1056, %v895
  %v1064 = vadd.f32 %v1062, %v1063
  %s1065 = smul.u32 4, 3
  %s1066 = smul.addr %s1065, 8
  %s1067 = scalar_lea.vmem [#allocation3], %s1066
  %v1068 = vld [vmem:[%s1067] sm:$0xff]
  %v1069 = vld [vmem:[%s1067 + $0x8] sm:$0xff]
  %v1070 = vld [vmem:[%s1067 + $0x10] sm:$0xff]
  %1071 = vmatprep.subr.mxu0 %v393
  %1072 = vmatpush1.msra.mxu0 %v392
  %1073 = vmatprep.subr.mxu0 %v390
  %1074 = vmatpush1.msra.mxu0 %v389
  %1075 = vmatprep.subr.mxu0 %v387
  %1076 = vmatpush1.msra.mxu0 %v386
  %1077 = vmatprep.subr.mxu0 %v384
  %1078 = vmatpush1.msra.mxu0 %v383
  %1079 = vmatprep.subr.mxu0 %v381
  %1080 = vmatpush1.msra.mxu0 %v380
  %1081 = vmatprep.subr.mxu0 %v378
  %1082 = vmatpush1.msra.mxu0 %v377
  %1083 = vmatprep.subr.mxu0 %v375
  %1084 = vmatpush1.msra.mxu0 %v374
  %1085 = vmatprep.subr.mxu0 %v372
  %1086 = vmatpush1.msra.mxu0 %v371
  %1087 = vmatprep.subr.mxu0 %v369
  %1088 = vmatpush1.msra.mxu0 %v368
  %1089 = vmatprep.subr.mxu0 %v366
  %1090 = vmatpush1.msra.mxu0 %v365
  %1091 = vmatprep.subr.mxu0 %v363
  %1092 = vmatpush1.msra.mxu0 %v362
  %1093 = vmatprep.subr.mxu0 %v360
  %1094 = vmatpush1.msra.mxu0 %v359
  %1095 = vmatprep.subr.mxu0 %v357
  %1096 = vmatpush1.msra.mxu0 %v356
  %1097 = vmatprep.subr.mxu0 %v354
  %1098 = vmatpush1.msra.mxu0 %v353
  %1099 = vmatprep.subr.mxu0 %v351
  %1100 = vmatpush1.msra.mxu0 %v350
  %1101 = vmatprep.subr.mxu0 %v348
  %1102 = vmatpush1.msra.mxu0 %v347
  %1103 = vmatprep.subr.mxu0 0.0
  %1104 = vmatpush2.msra.mxu0 0.0
  %1105 = vmatprep.subr.mxu0 0.0
  %1106 = vmatpush2.msra.mxu0 0.0
  %1107 = vmatprep.subr.mxu0 0.0
  %1108 = vmatpush2.msra.mxu0 0.0
  %1109 = vmatprep.subr.mxu0 0.0
  %1110 = vmatpush2.msra.mxu0 0.0
  %1111 = vmatprep.subr.mxu0 0.0
  %1112 = vmatpush2.msra.mxu0 0.0
  %1113 = vmatprep.subr.mxu0 0.0
  %1114 = vmatpush2.msra.mxu0 0.0
  %1115 = vmatprep.subr.mxu0 0.0
  %1116 = vmatpush2.msra.mxu0 0.0
  %1117 = vmatprep.subr.mxu0 0.0
  %1118 = vmatpush2.msra.mxu0 0.0
  %1119 = vmatprep.subr.mxu0 0.0
  %1120 = vmatpush2.msra.mxu0 0.0
  %1121 = vmatprep.subr.mxu0 0.0
  %1122 = vmatpush2.msra.mxu0 0.0
  %1123 = vmatprep.subr.mxu0 0.0
  %1124 = vmatpush2.msra.mxu0 0.0
  %1125 = vmatprep.subr.mxu0 0.0
  %1126 = vmatpush2.msra.mxu0 0.0
  %1127 = vmatprep.subr.mxu0 0.0
  %1128 = vmatpush2.msra.mxu0 0.0
  %1129 = vmatprep.subr.mxu0 0.0
  %1130 = vmatpush2.msra.mxu0 0.0
  %1131 = vmatprep.subr.mxu0 0.0
  %1132 = vmatpush2.msra.mxu0 0.0
  %1133 = vmatprep.subr.mxu0 0.0
  %1134 = vmatpush2.msra.mxu0 0.0
  %1135 = vmatprep.mubr.f32.mxu0 0.0
  %1136 = vmatmul.mubr.f32.gmra.mxu0 %v1064
  %v1137 = vpop.f32.mrf.mxu0
  %v1138 = vadd.f32 0.0, %v1137
  %v1139 = vpop.f32.mrf.mxu0
  %v1140 = vadd.f32 0.0, %v1139
  %1141 = vdwg.mxu0
  %1142 = vmatprep.subr.mxu0 0.0
  %1143 = vmatpush1.msra.mxu0 %v394
  %1144 = vmatprep.subr.mxu0 0.0
  %1145 = vmatpush1.msra.mxu0 %v391
  %1146 = vmatprep.subr.mxu0 0.0
  %1147 = vmatpush1.msra.mxu0 %v388
  %1148 = vmatprep.subr.mxu0 0.0
  %1149 = vmatpush1.msra.mxu0 %v385
  %1150 = vmatprep.subr.mxu0 0.0
  %1151 = vmatpush1.msra.mxu0 %v382
  %1152 = vmatprep.subr.mxu0 0.0
  %1153 = vmatpush1.msra.mxu0 %v379
  %1154 = vmatprep.subr.mxu0 0.0
  %1155 = vmatpush1.msra.mxu0 %v376
  %1156 = vmatprep.subr.mxu0 0.0
  %1157 = vmatpush1.msra.mxu0 %v373
  %1158 = vmatprep.subr.mxu0 0.0
  %1159 = vmatpush1.msra.mxu0 %v370
  %1160 = vmatprep.subr.mxu0 0.0
  %1161 = vmatpush1.msra.mxu0 %v367
  %1162 = vmatprep.subr.mxu0 0.0
  %1163 = vmatpush1.msra.mxu0 %v364
  %1164 = vmatprep.subr.mxu0 0.0
  %1165 = vmatpush1.msra.mxu0 %v361
  %1166 = vmatprep.subr.mxu0 0.0
  %1167 = vmatpush1.msra.mxu0 %v358
  %1168 = vmatprep.subr.mxu0 0.0
  %1169 = vmatpush1.msra.mxu0 %v355
  %1170 = vmatprep.subr.mxu0 0.0
  %1171 = vmatpush1.msra.mxu0 %v352
  %1172 = vmatprep.subr.mxu0 0.0
  %1173 = vmatpush1.msra.mxu0 %v349
  %1174 = vmatprep.subr.mxu0 0.0
  %1175 = vmatpush2.msra.mxu0 0.0
  %1176 = vmatprep.subr.mxu0 0.0
  %1177 = vmatpush2.msra.mxu0 0.0
  %1178 = vmatprep.subr.mxu0 0.0
  %1179 = vmatpush2.msra.mxu0 0.0
  %1180 = vmatprep.subr.mxu0 0.0
  %1181 = vmatpush2.msra.mxu0 0.0
  %1182 = vmatprep.subr.mxu0 0.0
  %1183 = vmatpush2.msra.mxu0 0.0
  %1184 = vmatprep.subr.mxu0 0.0
  %1185 = vmatpush2.msra.mxu0 0.0
  %1186 = vmatprep.subr.mxu0 0.0
  %1187 = vmatpush2.msra.mxu0 0.0
  %1188 = vmatprep.subr.mxu0 0.0
  %1189 = vmatpush2.msra.mxu0 0.0
  %1190 = vmatprep.subr.mxu0 0.0
  %1191 = vmatpush2.msra.mxu0 0.0
  %1192 = vmatprep.subr.mxu0 0.0
  %1193 = vmatpush2.msra.mxu0 0.0
  %1194 = vmatprep.subr.mxu0 0.0
  %1195 = vmatpush2.msra.mxu0 0.0
  %1196 = vmatprep.subr.mxu0 0.0
  %1197 = vmatpush2.msra.mxu0 0.0
  %1198 = vmatprep.subr.mxu0 0.0
  %1199 = vmatpush2.msra.mxu0 0.0
  %1200 = vmatprep.subr.mxu0 0.0
  %1201 = vmatpush2.msra.mxu0 0.0
  %1202 = vmatprep.subr.mxu0 0.0
  %1203 = vmatpush2.msra.mxu0 0.0
  %1204 = vmatprep.subr.mxu0 0.0
  %1205 = vmatpush2.msra.mxu0 0.0
  %1206 = vmatprep.mubr.f32.mxu0 0.0
  %1207 = vmatmul.mubr.f32.gmra.mxu0 %v1064
  %v1208 = vpop.f32.mrf.mxu0
  %v1209 = vadd.f32 0.0, %v1208
  %v1210 = vpop.f32.mrf.mxu0
  %1211 = vdwg.mxu0
  %v1212 = vadd.f32 %v1068, %v1138
  %v1213 = vxor.u32 %v1212, 2147483648
  %v1214 = vmul.f32 %v1213, 1.442695
  %v1215 = vpow.pop %v1214
  %v1216 = vadd.f32 %v1215, 1.0
  %v1217 = vrcp.pop %v1216
  %v1218 = vmul.f32 1.0, %v1217
  %v1219 = vadd.f32 %v1069, %v1140
  %v1220 = vxor.u32 %v1219, 2147483648
  %v1221 = vmul.f32 %v1220, 1.442695
  %v1222 = vpow.pop %v1221
  %v1223 = vadd.f32 %v1222, 1.0
  %v1224 = vrcp.pop %v1223
  %v1225 = vmul.f32 1.0, %v1224
  %v1226 = vadd.f32 %v1209, %v338
  %v1227 = vmul.f32 %v1218, %v1226
  %v1228 = vadd.f32 %v1070, %v1227
  %v1229 = vtanh.pop %v1228
  %v1230 = vsub.f32 1.0, %v1225
  %v1231 = vmul.f32 %v1230, %v1229
  %v1232 = vmul.f32 %v1225, %v1064
  %v1233 = vadd.f32 %v1231, %v1232
  %s1234 = smul.u32 5, 3
  %s1235 = smul.addr %s1234, 8
  %s1236 = scalar_lea.vmem [#allocation3], %s1235
  %v1237 = vld [vmem:[%s1236] sm:$0xff]
  %v1238 = vld [vmem:[%s1236 + $0x8] sm:$0xff]
  %v1239 = vld [vmem:[%s1236 + $0x10] sm:$0xff]
  %1240 = vmatprep.subr.mxu0 %v393
  %1241 = vmatpush1.msra.mxu0 %v392
  %1242 = vmatprep.subr.mxu0 %v390
  %1243 = vmatpush1.msra.mxu0 %v389
  %1244 = vmatprep.subr.mxu0 %v387
  %1245 = vmatpush1.msra.mxu0 %v386
  %1246 = vmatprep.subr.mxu0 %v384
  %1247 = vmatpush1.msra.mxu0 %v383
  %1248 = vmatprep.subr.mxu0 %v381
  %1249 = vmatpush1.msra.mxu0 %v380
  %1250 = vmatprep.subr.mxu0 %v378
  %1251 = vmatpush1.msra.mxu0 %v377
  %1252 = vmatprep.subr.mxu0 %v375
  %1253 = vmatpush1.msra.mxu0 %v374
  %1254 = vmatprep.subr.mxu0 %v372
  %1255 = vmatpush1.msra.mxu0 %v371
  %1256 = vmatprep.subr.mxu0 %v369
  %1257 = vmatpush1.msra.mxu0 %v368
  %1258 = vmatprep.subr.mxu0 %v366
  %1259 = vmatpush1.msra.mxu0 %v365
  %1260 = vmatprep.subr.mxu0 %v363
  %1261 = vmatpush1.msra.mxu0 %v362
  %1262 = vmatprep.subr.mxu0 %v360
  %1263 = vmatpush1.msra.mxu0 %v359
  %1264 = vmatprep.subr.mxu0 %v357
  %1265 = vmatpush1.msra.mxu0 %v356
  %1266 = vmatprep.subr.mxu0 %v354
  %1267 = vmatpush1.msra.mxu0 %v353
  %1268 = vmatprep.subr.mxu0 %v351
  %1269 = vmatpush1.msra.mxu0 %v350
  %1270 = vmatprep.subr.mxu0 %v348
  %1271 = vmatpush1.msra.mxu0 %v347
  %1272 = vmatprep.subr.mxu0 0.0
  %1273 = vmatpush2.msra.mxu0 0.0
  %1274 = vmatprep.subr.mxu0 0.0
  %1275 = vmatpush2.msra.mxu0 0.0
  %1276 = vmatprep.subr.mxu0 0.0
  %1277 = vmatpush2.msra.mxu0 0.0
  %1278 = vmatprep.subr.mxu0 0.0
  %1279 = vmatpush2.msra.mxu0 0.0
  %1280 = vmatprep.subr.mxu0 0.0
  %1281 = vmatpush2.msra.mxu0 0.0
  %1282 = vmatprep.subr.mxu0 0.0
  %1283 = vmatpush2.msra.mxu0 0.0
  %1284 = vmatprep.subr.mxu0 0.0
  %1285 = vmatpush2.msra.mxu0 0.0
  %1286 = vmatprep.subr.mxu0 0.0
  %1287 = vmatpush2.msra.mxu0 0.0
  %1288 = vmatprep.subr.mxu0 0.0
  %1289 = vmatpush2.msra.mxu0 0.0
  %1290 = vmatprep.subr.mxu0 0.0
  %1291 = vmatpush2.msra.mxu0 0.0
  %1292 = vmatprep.subr.mxu0 0.0
  %1293 = vmatpush2.msra.mxu0 0.0
  %1294 = vmatprep.subr.mxu0 0.0
  %1295 = vmatpush2.msra.mxu0 0.0
  %1296 = vmatprep.subr.mxu0 0.0
  %1297 = vmatpush2.msra.mxu0 0.0
  %1298 = vmatprep.subr.mxu0 0.0
  %1299 = vmatpush2.msra.mxu0 0.0
  %1300 = vmatprep.subr.mxu0 0.0
  %1301 = vmatpush2.msra.mxu0 0.0
  %1302 = vmatprep.subr.mxu0 0.0
  %1303 = vmatpush2.msra.mxu0 0.0
  %1304 = vmatprep.mubr.f32.mxu0 0.0
  %1305 = vmatmul.mubr.f32.gmra.mxu0 %v1233
  %v1306 = vpop.f32.mrf.mxu0
  %v1307 = vadd.f32 0.0, %v1306
  %v1308 = vpop.f32.mrf.mxu0
  %v1309 = vadd.f32 0.0, %v1308
  %1310 = vdwg.mxu0
  %1311 = vmatprep.subr.mxu0 0.0
  %1312 = vmatpush1.msra.mxu0 %v394
  %1313 = vmatprep.subr.mxu0 0.0
  %1314 = vmatpush1.msra.mxu0 %v391
  %1315 = vmatprep.subr.mxu0 0.0
  %1316 = vmatpush1.msra.mxu0 %v388
  %1317 = vmatprep.subr.mxu0 0.0
  %1318 = vmatpush1.msra.mxu0 %v385
  %1319 = vmatprep.subr.mxu0 0.0
  %1320 = vmatpush1.msra.mxu0 %v382
  %1321 = vmatprep.subr.mxu0 0.0
  %1322 = vmatpush1.msra.mxu0 %v379
  %1323 = vmatprep.subr.mxu0 0.0
  %1324 = vmatpush1.msra.mxu0 %v376
  %1325 = vmatprep.subr.mxu0 0.0
  %1326 = vmatpush1.msra.mxu0 %v373
  %1327 = vmatprep.subr.mxu0 0.0
  %1328 = vmatpush1.msra.mxu0 %v370
  %1329 = vmatprep.subr.mxu0 0.0
  %1330 = vmatpush1.msra.mxu0 %v367
  %1331 = vmatprep.subr.mxu0 0.0
  %1332 = vmatpush1.msra.mxu0 %v364
  %1333 = vmatprep.subr.mxu0 0.0
  %1334 = vmatpush1.msra.mxu0 %v361
  %1335 = vmatprep.subr.mxu0 0.0
  %1336 = vmatpush1.msra.mxu0 %v358
  %1337 = vmatprep.subr.mxu0 0.0
  %1338 = vmatpush1.msra.mxu0 %v355
  %1339 = vmatprep.subr.mxu0 0.0
  %1340 = vmatpush1.msra.mxu0 %v352
  %1341 = vmatprep.subr.mxu0 0.0
  %1342 = vmatpush1.msra.mxu0 %v349
  %1343 = vmatprep.subr.mxu0 0.0
  %1344 = vmatpush2.msra.mxu0 0.0
  %1345 = vmatprep.subr.mxu0 0.0
  %1346 = vmatpush2.msra.mxu0 0.0
  %1347 = vmatprep.subr.mxu0 0.0
  %1348 = vmatpush2.msra.mxu0 0.0
  %1349 = vmatprep.subr.mxu0 0.0
  %1350 = vmatpush2.msra.mxu0 0.0
  %1351 = vmatprep.subr.mxu0 0.0
  %1352 = vmatpush2.msra.mxu0 0.0
  %1353 = vmatprep.subr.mxu0 0.0
  %1354 = vmatpush2.msra.mxu0 0.0
  %1355 = vmatprep.subr.mxu0 0.0
  %1356 = vmatpush2.msra.mxu0 0.0
  %1357 = vmatprep.subr.mxu0 0.0
  %1358 = vmatpush2.msra.mxu0 0.0
  %1359 = vmatprep.subr.mxu0 0.0
  %1360 = vmatpush2.msra.mxu0 0.0
  %1361 = vmatprep.subr.mxu0 0.0
  %1362 = vmatpush2.msra.mxu0 0.0
  %1363 = vmatprep.subr.mxu0 0.0
  %1364 = vmatpush2.msra.mxu0 0.0
  %1365 = vmatprep.subr.mxu0 0.0
  %1366 = vmatpush2.msra.mxu0 0.0
  %1367 = vmatprep.subr.mxu0 0.0
  %1368 = vmatpush2.msra.mxu0 0.0
  %1369 = vmatprep.subr.mxu0 0.0
  %1370 = vmatpush2.msra.mxu0 0.0
  %1371 = vmatprep.subr.mxu0 0.0
  %1372 = vmatpush2.msra.mxu0 0.0
  %1373 = vmatprep.subr.mxu0 0.0
  %1374 = vmatpush2.msra.mxu0 0.0
  %1375 = vmatprep.mubr.f32.mxu0 0.0
  %1376 = vmatmul.mubr.f32.gmra.mxu0 %v1233
  %v1377 = vpop.f32.mrf.mxu0
  %v1378 = vadd.f32 0.0, %v1377
  %v1379 = vpop.f32.mrf.mxu0
  %1380 = vdwg.mxu0
  %v1381 = vadd.f32 %v1237, %v1307
  %v1382 = vxor.u32 %v1381, 2147483648
  %v1383 = vmul.f32 %v1382, 1.442695
  %v1384 = vpow.pop %v1383
  %v1385 = vadd.f32 %v1384, 1.0
  %v1386 = vrcp.pop %v1385
  %v1387 = vmul.f32 1.0, %v1386
  %v1388 = vadd.f32 %v1238, %v1309
  %v1389 = vxor.u32 %v1388, 2147483648
  %v1390 = vmul.f32 %v1389, 1.442695
  %v1391 = vpow.pop %v1390
  %v1392 = vadd.f32 %v1391, 1.0
  %v1393 = vrcp.pop %v1392
  %v1394 = vmul.f32 1.0, %v1393
  %v1395 = vadd.f32 %v1378, %v338
  %v1396 = vmul.f32 %v1387, %v1395
  %v1397 = vadd.f32 %v1239, %v1396
  %v1398 = vtanh.pop %v1397
  %v1399 = vsub.f32 1.0, %v1394
  %v1400 = vmul.f32 %v1399, %v1398
  %v1401 = vmul.f32 %v1394, %v1233
  %v1402 = vadd.f32 %v1400, %v1401
  %s1403 = smul.u32 6, 3
  %s1404 = smul.addr %s1403, 8
  %s1405 = scalar_lea.vmem [#allocation3], %s1404
  %v1406 = vld [vmem:[%s1405] sm:$0xff]
  %v1407 = vld [vmem:[%s1405 + $0x8] sm:$0xff]
  %v1408 = vld [vmem:[%s1405 + $0x10] sm:$0xff]
  %1409 = vmatprep.subr.mxu0 %v393
  %1410 = vmatpush1.msra.mxu0 %v392
  %1411 = vmatprep.subr.mxu0 %v390
  %1412 = vmatpush1.msra.mxu0 %v389
  %1413 = vmatprep.subr.mxu0 %v387
  %1414 = vmatpush1.msra.mxu0 %v386
  %1415 = vmatprep.subr.mxu0 %v384
  %1416 = vmatpush1.msra.mxu0 %v383
  %1417 = vmatprep.subr.mxu0 %v381
  %1418 = vmatpush1.msra.mxu0 %v380
  %1419 = vmatprep.subr.mxu0 %v378
  %1420 = vmatpush1.msra.mxu0 %v377
  %1421 = vmatprep.subr.mxu0 %v375
  %1422 = vmatpush1.msra.mxu0 %v374
  %1423 = vmatprep.subr.mxu0 %v372
  %1424 = vmatpush1.msra.mxu0 %v371
  %1425 = vmatprep.subr.mxu0 %v369
  %1426 = vmatpush1.msra.mxu0 %v368
  %1427 = vmatprep.subr.mxu0 %v366
  %1428 = vmatpush1.msra.mxu0 %v365
  %1429 = vmatprep.subr.mxu0 %v363
  %1430 = vmatpush1.msra.mxu0 %v362
  %1431 = vmatprep.subr.mxu0 %v360
  %1432 = vmatpush1.msra.mxu0 %v359
  %1433 = vmatprep.subr.mxu0 %v357
  %1434 = vmatpush1.msra.mxu0 %v356
  %1435 = vmatprep.subr.mxu0 %v354
  %1436 = vmatpush1.msra.mxu0 %v353
  %1437 = vmatprep.subr.mxu0 %v351
  %1438 = vmatpush1.msra.mxu0 %v350
  %1439 = vmatprep.subr.mxu0 %v348
  %1440 = vmatpush1.msra.mxu0 %v347
  %1441 = vmatprep.subr.mxu0 0.0
  %1442 = vmatpush2.msra.mxu0 0.0
  %1443 = vmatprep.subr.mxu0 0.0
  %1444 = vmatpush2.msra.mxu0 0.0
  %1445 = vmatprep.subr.mxu0 0.0
  %1446 = vmatpush2.msra.mxu0 0.0
  %1447 = vmatprep.subr.mxu0 0.0
  %1448 = vmatpush2.msra.mxu0 0.0
  %1449 = vmatprep.subr.mxu0 0.0
  %1450 = vmatpush2.msra.mxu0 0.0
  %1451 = vmatprep.subr.mxu0 0.0
  %1452 = vmatpush2.msra.mxu0 0.0
  %1453 = vmatprep.subr.mxu0 0.0
  %1454 = vmatpush2.msra.mxu0 0.0
  %1455 = vmatprep.subr.mxu0 0.0
  %1456 = vmatpush2.msra.mxu0 0.0
  %1457 = vmatprep.subr.mxu0 0.0
  %1458 = vmatpush2.msra.mxu0 0.0
  %1459 = vmatprep.subr.mxu0 0.0
  %1460 = vmatpush2.msra.mxu0 0.0
  %1461 = vmatprep.subr.mxu0 0.0
  %1462 = vmatpush2.msra.mxu0 0.0
  %1463 = vmatprep.subr.mxu0 0.0
  %1464 = vmatpush2.msra.mxu0 0.0
  %1465 = vmatprep.subr.mxu0 0.0
  %1466 = vmatpush2.msra.mxu0 0.0
  %1467 = vmatprep.subr.mxu0 0.0
  %1468 = vmatpush2.msra.mxu0 0.0
  %1469 = vmatprep.subr.mxu0 0.0
  %1470 = vmatpush2.msra.mxu0 0.0
  %1471 = vmatprep.subr.mxu0 0.0
  %1472 = vmatpush2.msra.mxu0 0.0
  %1473 = vmatprep.mubr.f32.mxu0 0.0
  %1474 = vmatmul.mubr.f32.gmra.mxu0 %v1402
  %v1475 = vpop.f32.mrf.mxu0
  %v1476 = vadd.f32 0.0, %v1475
  %v1477 = vpop.f32.mrf.mxu0
  %v1478 = vadd.f32 0.0, %v1477
  %1479 = vdwg.mxu0
  %1480 = vmatprep.subr.mxu0 0.0
  %1481 = vmatpush1.msra.mxu0 %v394
  %1482 = vmatprep.subr.mxu0 0.0
  %1483 = vmatpush1.msra.mxu0 %v391
  %1484 = vmatprep.subr.mxu0 0.0
  %1485 = vmatpush1.msra.mxu0 %v388
  %1486 = vmatprep.subr.mxu0 0.0
  %1487 = vmatpush1.msra.mxu0 %v385
  %1488 = vmatprep.subr.mxu0 0.0
  %1489 = vmatpush1.msra.mxu0 %v382
  %1490 = vmatprep.subr.mxu0 0.0
  %1491 = vmatpush1.msra.mxu0 %v379
  %1492 = vmatprep.subr.mxu0 0.0
  %1493 = vmatpush1.msra.mxu0 %v376
  %1494 = vmatprep.subr.mxu0 0.0
  %1495 = vmatpush1.msra.mxu0 %v373
  %1496 = vmatprep.subr.mxu0 0.0
  %1497 = vmatpush1.msra.mxu0 %v370
  %1498 = vmatprep.subr.mxu0 0.0
  %1499 = vmatpush1.msra.mxu0 %v367
  %1500 = vmatprep.subr.mxu0 0.0
  %1501 = vmatpush1.msra.mxu0 %v364
  %1502 = vmatprep.subr.mxu0 0.0
  %1503 = vmatpush1.msra.mxu0 %v361
  %1504 = vmatprep.subr.mxu0 0.0
  %1505 = vmatpush1.msra.mxu0 %v358
  %1506 = vmatprep.subr.mxu0 0.0
  %1507 = vmatpush1.msra.mxu0 %v355
  %1508 = vmatprep.subr.mxu0 0.0
  %1509 = vmatpush1.msra.mxu0 %v352
  %1510 = vmatprep.subr.mxu0 0.0
  %1511 = vmatpush1.msra.mxu0 %v349
  %1512 = vmatprep.subr.mxu0 0.0
  %1513 = vmatpush2.msra.mxu0 0.0
  %1514 = vmatprep.subr.mxu0 0.0
  %1515 = vmatpush2.msra.mxu0 0.0
  %1516 = vmatprep.subr.mxu0 0.0
  %1517 = vmatpush2.msra.mxu0 0.0
  %1518 = vmatprep.subr.mxu0 0.0
  %1519 = vmatpush2.msra.mxu0 0.0
  %1520 = vmatprep.subr.mxu0 0.0
  %1521 = vmatpush2.msra.mxu0 0.0
  %1522 = vmatprep.subr.mxu0 0.0
  %1523 = vmatpush2.msra.mxu0 0.0
  %1524 = vmatprep.subr.mxu0 0.0
  %1525 = vmatpush2.msra.mxu0 0.0
  %1526 = vmatprep.subr.mxu0 0.0
  %1527 = vmatpush2.msra.mxu0 0.0
  %1528 = vmatprep.subr.mxu0 0.0
  %1529 = vmatpush2.msra.mxu0 0.0
  %1530 = vmatprep.subr.mxu0 0.0
  %1531 = vmatpush2.msra.mxu0 0.0
  %1532 = vmatprep.subr.mxu0 0.0
  %1533 = vmatpush2.msra.mxu0 0.0
  %1534 = vmatprep.subr.mxu0 0.0
  %1535 = vmatpush2.msra.mxu0 0.0
  %1536 = vmatprep.subr.mxu0 0.0
  %1537 = vmatpush2.msra.mxu0 0.0
  %1538 = vmatprep.subr.mxu0 0.0
  %1539 = vmatpush2.msra.mxu0 0.0
  %1540 = vmatprep.subr.mxu0 0.0
  %1541 = vmatpush2.msra.mxu0 0.0
  %1542 = vmatprep.subr.mxu0 0.0
  %1543 = vmatpush2.msra.mxu0 0.0
  %1544 = vmatprep.mubr.f32.mxu0 0.0
  %1545 = vmatmul.mubr.f32.gmra.mxu0 %v1402
  %v1546 = vpop.f32.mrf.mxu0
  %v1547 = vadd.f32 0.0, %v1546
  %v1548 = vpop.f32.mrf.mxu0
  %1549 = vdwg.mxu0
  %v1550 = vadd.f32 %v1406, %v1476
  %v1551 = vxor.u32 %v1550, 2147483648
  %v1552 = vmul.f32 %v1551, 1.442695
  %v1553 = vpow.pop %v1552
  %v1554 = vadd.f32 %v1553, 1.0
  %v1555 = vrcp.pop %v1554
  %v1556 = vmul.f32 1.0, %v1555
  %v1557 = vadd.f32 %v1407, %v1478
  %v1558 = vxor.u32 %v1557, 2147483648
  %v1559 = vmul.f32 %v1558, 1.442695
  %v1560 = vpow.pop %v1559
  %v1561 = vadd.f32 %v1560, 1.0
  %v1562 = vrcp.pop %v1561
  %v1563 = vmul.f32 1.0, %v1562
  %v1564 = vadd.f32 %v1547, %v338
  %v1565 = vmul.f32 %v1556, %v1564
  %v1566 = vadd.f32 %v1408, %v1565
  %v1567 = vtanh.pop %v1566
  %v1568 = vsub.f32 1.0, %v1563
  %v1569 = vmul.f32 %v1568, %v1567
  %v1570 = vmul.f32 %v1563, %v1402
  %v1571 = vadd.f32 %v1569, %v1570
  %s1572 = smul.u32 7, 3
  %s1573 = smul.addr %s1572, 8
  %s1574 = scalar_lea.vmem [#allocation3], %s1573
  %v1575 = vld [vmem:[%s1574] sm:$0xff]
  %v1576 = vld [vmem:[%s1574 + $0x8] sm:$0xff]
  %v1577 = vld [vmem:[%s1574 + $0x10] sm:$0xff]
  %1578 = vmatprep.subr.mxu0 %v393
  %1579 = vmatpush1.msra.mxu0 %v392
  %1580 = vmatprep.subr.mxu0 %v390
  %1581 = vmatpush1.msra.mxu0 %v389
  %1582 = vmatprep.subr.mxu0 %v387
  %1583 = vmatpush1.msra.mxu0 %v386
  %1584 = vmatprep.subr.mxu0 %v384
  %1585 = vmatpush1.msra.mxu0 %v383
  %1586 = vmatprep.subr.mxu0 %v381
  %1587 = vmatpush1.msra.mxu0 %v380
  %1588 = vmatprep.subr.mxu0 %v378
  %1589 = vmatpush1.msra.mxu0 %v377
  %1590 = vmatprep.subr.mxu0 %v375
  %1591 = vmatpush1.msra.mxu0 %v374
  %1592 = vmatprep.subr.mxu0 %v372
  %1593 = vmatpush1.msra.mxu0 %v371
  %1594 = vmatprep.subr.mxu0 %v369
  %1595 = vmatpush1.msra.mxu0 %v368
  %1596 = vmatprep.subr.mxu0 %v366
  %1597 = vmatpush1.msra.mxu0 %v365
  %1598 = vmatprep.subr.mxu0 %v363
  %1599 = vmatpush1.msra.mxu0 %v362
  %1600 = vmatprep.subr.mxu0 %v360
  %1601 = vmatpush1.msra.mxu0 %v359
  %1602 = vmatprep.subr.mxu0 %v357
  %1603 = vmatpush1.msra.mxu0 %v356
  %1604 = vmatprep.subr.mxu0 %v354
  %1605 = vmatpush1.msra.mxu0 %v353
  %1606 = vmatprep.subr.mxu0 %v351
  %1607 = vmatpush1.msra.mxu0 %v350
  %1608 = vmatprep.subr.mxu0 %v348
  %1609 = vmatpush1.msra.mxu0 %v347
  %1610 = vmatprep.subr.mxu0 0.0
  %1611 = vmatpush2.msra.mxu0 0.0
  %1612 = vmatprep.subr.mxu0 0.0
  %1613 = vmatpush2.msra.mxu0 0.0
  %1614 = vmatprep.subr.mxu0 0.0
  %1615 = vmatpush2.msra.mxu0 0.0
  %1616 = vmatprep.subr.mxu0 0.0
  %1617 = vmatpush2.msra.mxu0 0.0
  %1618 = vmatprep.subr.mxu0 0.0
  %1619 = vmatpush2.msra.mxu0 0.0
  %1620 = vmatprep.subr.mxu0 0.0
  %1621 = vmatpush2.msra.mxu0 0.0
  %1622 = vmatprep.subr.mxu0 0.0
  %1623 = vmatpush2.msra.mxu0 0.0
  %1624 = vmatprep.subr.mxu0 0.0
  %1625 = vmatpush2.msra.mxu0 0.0
  %1626 = vmatprep.subr.mxu0 0.0
  %1627 = vmatpush2.msra.mxu0 0.0
  %1628 = vmatprep.subr.mxu0 0.0
  %1629 = vmatpush2.msra.mxu0 0.0
  %1630 = vmatprep.subr.mxu0 0.0
  %1631 = vmatpush2.msra.mxu0 0.0
  %1632 = vmatprep.subr.mxu0 0.0
  %1633 = vmatpush2.msra.mxu0 0.0
  %1634 = vmatprep.subr.mxu0 0.0
  %1635 = vmatpush2.msra.mxu0 0.0
  %1636 = vmatprep.subr.mxu0 0.0
  %1637 = vmatpush2.msra.mxu0 0.0
  %1638 = vmatprep.subr.mxu0 0.0
  %1639 = vmatpush2.msra.mxu0 0.0
  %1640 = vmatprep.subr.mxu0 0.0
  %1641 = vmatpush2.msra.mxu0 0.0
  %1642 = vmatprep.mubr.f32.mxu0 0.0
  %1643 = vmatmul.mubr.f32.gmra.mxu0 %v1571
  %v1644 = vpop.f32.mrf.mxu0
  %v1645 = vadd.f32 0.0, %v1644
  %v1646 = vpop.f32.mrf.mxu0
  %v1647 = vadd.f32 0.0, %v1646
  %1648 = vdwg.mxu0
  %1649 = vmatprep.subr.mxu0 0.0
  %1650 = vmatpush1.msra.mxu0 %v394
  %1651 = vmatprep.subr.mxu0 0.0
  %1652 = vmatpush1.msra.mxu0 %v391
  %1653 = vmatprep.subr.mxu0 0.0
  %1654 = vmatpush1.msra.mxu0 %v388
  %1655 = vmatprep.subr.mxu0 0.0
  %1656 = vmatpush1.msra.mxu0 %v385
  %1657 = vmatprep.subr.mxu0 0.0
  %1658 = vmatpush1.msra.mxu0 %v382
  %1659 = vmatprep.subr.mxu0 0.0
  %1660 = vmatpush1.msra.mxu0 %v379
  %1661 = vmatprep.subr.mxu0 0.0
  %1662 = vmatpush1.msra.mxu0 %v376
  %1663 = vmatprep.subr.mxu0 0.0
  %1664 = vmatpush1.msra.mxu0 %v373
  %1665 = vmatprep.subr.mxu0 0.0
  %1666 = vmatpush1.msra.mxu0 %v370
  %1667 = vmatprep.subr.mxu0 0.0
  %1668 = vmatpush1.msra.mxu0 %v367
  %1669 = vmatprep.subr.mxu0 0.0
  %1670 = vmatpush1.msra.mxu0 %v364
  %1671 = vmatprep.subr.mxu0 0.0
  %1672 = vmatpush1.msra.mxu0 %v361
  %1673 = vmatprep.subr.mxu0 0.0
  %1674 = vmatpush1.msra.mxu0 %v358
  %1675 = vmatprep.subr.mxu0 0.0
  %1676 = vmatpush1.msra.mxu0 %v355
  %1677 = vmatprep.subr.mxu0 0.0
  %1678 = vmatpush1.msra.mxu0 %v352
  %1679 = vmatprep.subr.mxu0 0.0
  %1680 = vmatpush1.msra.mxu0 %v349
  %1681 = vmatprep.subr.mxu0 0.0
  %1682 = vmatpush2.msra.mxu0 0.0
  %1683 = vmatprep.subr.mxu0 0.0
  %1684 = vmatpush2.msra.mxu0 0.0
  %1685 = vmatprep.subr.mxu0 0.0
  %1686 = vmatpush2.msra.mxu0 0.0
  %1687 = vmatprep.subr.mxu0 0.0
  %1688 = vmatpush2.msra.mxu0 0.0
  %1689 = vmatprep.subr.mxu0 0.0
  %1690 = vmatpush2.msra.mxu0 0.0
  %1691 = vmatprep.subr.mxu0 0.0
  %1692 = vmatpush2.msra.mxu0 0.0
  %1693 = vmatprep.subr.mxu0 0.0
  %1694 = vmatpush2.msra.mxu0 0.0
  %1695 = vmatprep.subr.mxu0 0.0
  %1696 = vmatpush2.msra.mxu0 0.0
  %1697 = vmatprep.subr.mxu0 0.0
  %1698 = vmatpush2.msra.mxu0 0.0
  %1699 = vmatprep.subr.mxu0 0.0
  %1700 = vmatpush2.msra.mxu0 0.0
  %1701 = vmatprep.subr.mxu0 0.0
  %1702 = vmatpush2.msra.mxu0 0.0
  %1703 = vmatprep.subr.mxu0 0.0
  %1704 = vmatpush2.msra.mxu0 0.0
  %1705 = vmatprep.subr.mxu0 0.0
  %1706 = vmatpush2.msra.mxu0 0.0
  %1707 = vmatprep.subr.mxu0 0.0
  %1708 = vmatpush2.msra.mxu0 0.0
  %1709 = vmatprep.subr.mxu0 0.0
  %1710 = vmatpush2.msra.mxu0 0.0
  %1711 = vmatprep.subr.mxu0 0.0
  %1712 = vmatpush2.msra.mxu0 0.0
  %1713 = vmatprep.mubr.f32.mxu0 0.0
  %1714 = vmatmul.mubr.f32.gmra.mxu0 %v1571
  %v1715 = vpop.f32.mrf.mxu0
  %v1716 = vadd.f32 0.0, %v1715
  %v1717 = vpop.f32.mrf.mxu0
  %1718 = vdwg.mxu0
  %v1719 = vadd.f32 %v1575, %v1645
  %v1720 = vxor.u32 %v1719, 2147483648
  %v1721 = vmul.f32 %v1720, 1.442695
  %v1722 = vpow.pop %v1721
  %v1723 = vadd.f32 %v1722, 1.0
  %v1724 = vrcp.pop %v1723
  %v1725 = vmul.f32 1.0, %v1724
  %v1726 = vadd.f32 %v1576, %v1647
  %v1727 = vxor.u32 %v1726, 2147483648
  %v1728 = vmul.f32 %v1727, 1.442695
  %v1729 = vpow.pop %v1728
  %v1730 = vadd.f32 %v1729, 1.0
  %v1731 = vrcp.pop %v1730
  %v1732 = vmul.f32 1.0, %v1731
  %v1733 = vadd.f32 %v1716, %v338
  %v1734 = vmul.f32 %v1725, %v1733
  %v1735 = vadd.f32 %v1577, %v1734
  %v1736 = vtanh.pop %v1735
  %v1737 = vsub.f32 1.0, %v1732
  %v1738 = vmul.f32 %v1737, %v1736
  %v1739 = vmul.f32 %v1732, %v1571
  %v1740 = vadd.f32 %v1738, %v1739
  %1741 = vst [vmem:[#allocation2] sm:$0xff] %v1740
  // Predicated region
  $region26: #{context_forward.1} parent=0 // pred_check
    %p1742 = pneg %p20
  $region27: #{context_forward.1} parent=0 // pred_check_branch
    %1744 = sbr.rel (%p1742) target = $region29
  $region28: #{context_forward.1} parent=0 // pred_region
    %v1745 = vld [vmem:[#allocation2] sm:$0xff]
    %1746 = vst [vmem:[%s5] sm:$0xff] %v1745
  $region29: #{context_forward.1} parent=0 // pred_fallthru
    _
  // Predicated region
  $region30: #{context_forward.1} parent=0 // pred_check
    _
  $region31: #{context_forward.1} parent=0 // pred_check_branch
    %1748 = sbr.rel (0) target = $region33
  $region32: #{context_forward.1} parent=0 // pred_region
    _
  $region33: #{context_forward.1} parent=0 // pred_fallthru
    _
  // Predicated region
  $region34: #{context_forward.1} parent=0 // pred_check
    _
  $region35: #{context_forward.1} parent=0 // pred_check_branch
    %1750 = sbr.rel (0) target = $region37
  $region36: #{context_forward.1} parent=0 // pred_region
    _
  $region37: #{context_forward.1} parent=0 // pred_fallthru
    _

</llo_original>
